<compile_context>
chip_gen: v6e
topology: v6e:2x2x1
jax: 0.10.0
libtpu: 0.0.40
codegen_flags: <defaults>
</compile_context>

<pallas_src>
import math

import jax
import jax.numpy as jnp
from jax.experimental import pallas as pl
from jax.experimental.pallas import tpu as pltpu

LANES = 128   # f32 vreg lane width / padded hidden width
FP = 8        # padded "small vector" width (n_features, n_handcrafted + n_action)
BP = 8        # batch rows padded to one full sublane group

# bias-row indices inside the f32 slab's 8-row bias block
R_BL, R_BF, R_B2, R_B3, R_BHA, R_BHG = 0, 1, 2, 3, 4, 5


# ----------------------------- slab layouts -----------------------------------
def _offsets_f32(H):
    """f32 slab: LSTM weights + all biases. 8-row-aligned block starts."""
    blocks = [("wih", FP), ("whh", H), ("bias", 8)]
    off, r = {}, 0
    for name, rows in blocks:
        r = (r + 7) & ~7
        off[name] = r
        r += rows
    return off, (r + 7) & ~7


def _offsets_bf16(H):
    """bf16 slab: feed-forward weights. 16-row-aligned (bf16 sublane tile) starts."""
    blocks = [("wfh", H), ("wfx", FP), ("w2", LANES), ("w3", LANES), ("heads", LANES)]
    off, r = {}, 0
    for name, rows in blocks:
        r = (r + 15) & ~15
        off[name] = r
        r += rows
    return off, (r + 15) & ~15


def pack_weights(p, *, n_features, n_hidden, n_handcrafted, n_action):
    """Pack PyTorch-layout params into (f32 slab, bf16 slab)."""
    H, F, NH, A = n_hidden, n_features, n_handcrafted, n_action
    FE = H + NH          # ActionModule feature_extractor width
    LH = 2 * FE          # ActionModule last_hidden
    GLH = H              # GlucoseModel last_hidden
    assert 4 * H <= LANES and LH + GLH <= LANES
    assert F <= FP and NH + A <= FP and 7 * A <= LANES

    # ---- f32 slab: LSTM weights + every bias ----
    o32, n32 = _offsets_f32(H)
    w32 = jnp.zeros((n32, LANES), jnp.float32)
    w32 = w32.at[o32["wih"]:o32["wih"] + F, :4 * H].set(p["w_ih"].T)
    w32 = w32.at[o32["whh"]:o32["whh"] + H, :4 * H].set(p["w_hh"].T)
    b0 = o32["bias"]
    w32 = w32.at[b0 + R_BL, :4 * H].set(p["b_ih"] + p["b_hh"])
    w32 = w32.at[b0 + R_BF, :LH].set(p["b1"])
    w32 = w32.at[b0 + R_BF, LH:LH + GLH].set(p["gb1"])
    w32 = w32.at[b0 + R_B2, :LH].set(p["b2"])
    w32 = w32.at[b0 + R_B3, :LH].set(p["b3"])
    w32 = w32.at[b0 + R_BHA, 0:A].set(p["bmu"])
    w32 = w32.at[b0 + R_BHA, A:2 * A].set(p["bsig"])
    w32 = w32.at[b0 + R_BHG, 2 * A:3 * A].set(p["bcmu"])
    w32 = w32.at[b0 + R_BHG, 3 * A:4 * A].set(p["bcsig"])

    # ---- bf16 slab: all feed-forward weights (column-packed action|glucose) ----
    obf, nbf = _offsets_bf16(H)
    wb = jnp.zeros((nbf, LANES), jnp.float32)
    w1t = p["w1"].T                                   # (FE, LH): rows 0:H=h, H:FE=feat
    gw1t = p["gw1"].T                                 # (H+A, GLH): rows 0:H=h, H:=old_action
    # fused first layer: action fc1 -> cols 0:LH, glucose fc1 -> cols LH:LH+GLH
    wb = wb.at[obf["wfh"]:obf["wfh"] + H, :LH].set(w1t[:H])
    wb = wb.at[obf["wfh"]:obf["wfh"] + H, LH:LH + GLH].set(gw1t[:H])
    wb = wb.at[obf["wfx"]:obf["wfx"] + NH, :LH].set(w1t[H:])
    wb = wb.at[obf["wfx"] + NH:obf["wfx"] + NH + A, LH:LH + GLH].set(gw1t[H:])
    wb = wb.at[obf["w2"]:obf["w2"] + LH, :LH].set(p["w2"].T)
    wb = wb.at[obf["w3"]:obf["w3"] + LH, :LH].set(p["w3"].T)
    # shared head block: action heads rows 0:LH cols 0:2A, glucose heads rows LH:LH+GLH cols 2A:4A
    wb = wb.at[obf["heads"]:obf["heads"] + LH, 0:A].set(p["wmu"].T)
    wb = wb.at[obf["heads"]:obf["heads"] + LH, A:2 * A].set(p["wsig"].T)
    wb = wb.at[obf["heads"] + LH:obf["heads"] + LH + GLH, 2 * A:3 * A].set(p["wcmu"].T)
    wb = wb.at[obf["heads"] + LH:obf["heads"] + LH + GLH, 3 * A:4 * A].set(p["wcsig"].T)
    return w32, wb.astype(jnp.bfloat16)


# ----------------------------- Pallas kernel ---------------------------------
def _make_kernel(T, H, A, o32, obf):
    b0 = o32["bias"]

    def kernel(data_ref, w32_ref, wbf_ref, z_ref, out_ref):
        f32, bf16 = jnp.float32, jnp.bfloat16

        # ---- f32 slab pieces ----
        w_ih = w32_ref[o32["wih"]:o32["wih"] + FP, :]           # (FP, 4H)
        w_hh = w32_ref[o32["whh"]:o32["whh"] + H, :]            # (H, 4H)
        bias = w32_ref[b0:b0 + 8, :]
        b_lstm = bias[R_BL:R_BL + 1, :]
        b_f = bias[R_BF:R_BF + 1, :]
        b_2 = bias[R_B2:R_B2 + 1, :]
        b_3 = bias[R_B3:R_B3 + 1, :]
        b_ha = bias[R_BHA:R_BHA + 1, :]
        b_hg = bias[R_BHG:R_BHG + 1, :]

        # ---- LSTM: input projection hoisted out of the recurrence ----
        x_all = data_ref[0:T * BP, :]                           # (T*BP, FP)
        xw = jnp.dot(x_all, w_ih, preferred_element_type=f32) + b_lstm   # (T*BP, 4H)

        lane = jax.lax.broadcasted_iota(jnp.int32, (BP, LANES), 1)       # hoisted
        g_band = (lane >= 2 * H) & (lane < 3 * H)

        h = jnp.zeros((BP, H), f32)
        c = jnp.zeros((BP, H), f32)
        for t in range(T):                                      # static -> fully unrolled
            gates = xw[t * BP:(t + 1) * BP, :] + jnp.dot(
                h, w_hh, preferred_element_type=f32)            # (BP, 4H) aligned slice
            # full-vreg nonlinearities: one sigmoid + one tanh + one masked select
            sg = jax.nn.sigmoid(gates)
            tg = jnp.tanh(gates)
            act = jnp.where(g_band, tg, sg)                     # [i | f | g(tanh) | o]
            i_g = act[:, 0 * H:1 * H]
            f_g = act[:, 1 * H:2 * H]
            g_g = act[:, 2 * H:3 * H]
            o_g = act[:, 3 * H:4 * H]
            c = f_g * c + i_g * g_g
            h = o_g * jnp.tanh(c)

        vec_in = data_ref[T * BP:(T + 1) * BP, :]               # (BP, FP) = [feat|old_action|0]

        # ---- fused ActionModule fc1 + GlucoseModel fc1 (bf16 MXU, f32 accum) ----
        wfh = wbf_ref[obf["wfh"]:obf["wfh"] + H, :]
        wfx = wbf_ref[obf["wfx"]:obf["wfx"] + FP, :]
        w2 = wbf_ref[obf["w2"]:obf["w2"] + LANES, :]
        w3 = wbf_ref[obf["w3"]:obf["w3"] + LANES, :]
        whd = wbf_ref[obf["heads"]:obf["heads"] + LANES, :]

        fused1 = jax.nn.relu(
            jnp.dot(h.astype(bf16), wfh, preferred_element_type=f32)
            + jnp.dot(vec_in.astype(bf16), wfx, preferred_element_type=f32)
            + b_f)                                              # lanes: [fc1 | g1 | 0]
        fc2 = jax.nn.relu(jnp.dot(fused1.astype(bf16), w2, preferred_element_type=f32) + b_2)
        fc3 = jax.nn.relu(jnp.dot(fc2.astype(bf16), w3, preferred_element_type=f32) + b_3)
        heads_a = jnp.dot(fc3.astype(bf16), whd, preferred_element_type=f32) + b_ha
        heads_g = jnp.dot(fused1.astype(bf16), whd, preferred_element_type=f32) + b_hg

        mu = jnp.tanh(heads_a[:, 0:A])
        sigma = jax.nn.sigmoid(heads_a[:, A:2 * A] + 1e-5)      # eps inside, as in torch ref
        cgm_mu = jnp.tanh(heads_g[:, 2 * A:3 * A])
        cgm_sigma = jax.nn.softplus(heads_g[:, 3 * A:4 * A] + 1e-5)

        z_a = z_ref[0]
        z_c = z_ref[1]
        action = jnp.clip(mu + sigma * z_a, -1.0, 1.0)
        # torch: Normal(mu, sigma).log_prob(action[0]) -> row 0 broadcast over batch
        a0 = action[0:1, :]
        logp = (-((a0 - mu) ** 2) / (2.0 * sigma * sigma)
                - jnp.log(sigma) - 0.5 * math.log(2.0 * math.pi))
        cgm = jnp.clip(cgm_mu + cgm_sigma * z_c, -1.0, 1.0)

        # ---- single lane-dense (BP,128) output tile; independent masked adds ----
        packed = jnp.zeros((BP, LANES), f32)
        for k, v in enumerate((mu, sigma, action, logp, cgm_mu, cgm_sigma, cgm)):
            for j in range(A):
                packed = packed + jnp.where(lane == (k * A + j), v[:, j:j + 1], 0.0)
        out_ref[...] = packed

    return kernel


# ----------------------------- wrapper (jit-fused) ----------------------------
def _actor_forward(s, feat, old_action, w32, wbf, z, *, n_hidden):
    """s: (B,T,F) batch_first; feat: (B,1,NH); old_action: (B,A); z: (2,)."""
    B, T, F = s.shape
    A = old_action.shape[1]
    NH = feat.shape[2]
    H = n_hidden
    assert B <= BP and F <= FP and NH + A <= FP

    o32, _ = _offsets_f32(H)
    obf, _ = _offsets_bf16(H)

    # One data slab: rows [t*BP + b] = s[b, t] (batch padded to 8 sublanes so every
    # per-step slice is sublane-aligned); last BP rows carry [feat | old_action | 0].
    s_t = jnp.transpose(s, (1, 0, 2)).astype(jnp.float32)            # (T, B, F)
    s_t = jnp.pad(s_t, ((0, 0), (0, BP - B), (0, FP - F)))
    vec = jnp.concatenate([feat[:, 0, :].astype(jnp.float32),
                           old_action.astype(jnp.float32)], axis=1)
    vec = jnp.pad(vec, ((0, BP - B), (0, FP - NH - A)))
    data = jnp.concatenate([s_t.reshape(T * BP, FP), vec], axis=0)   # (T*BP + BP, FP)

    kernel = _make_kernel(T, H, A, o32, obf)
    vmem = pl.BlockSpec(memory_space=pltpu.MemorySpace.VMEM)
    smem = pl.BlockSpec(memory_space=pltpu.MemorySpace.SMEM)

    out = pl.pallas_call(
        kernel,
        out_shape=jax.ShapeDtypeStruct((BP, LANES), jnp.float32),
        in_specs=[vmem, vmem, vmem, smem],
        out_specs=vmem,
    )(data, w32, wbf, z.astype(jnp.float32))

    return tuple(out[:B, k * A:(k + 1) * A] for k in range(7))


actor_forward = jax.jit(_actor_forward, static_argnames=("n_hidden",))


# ----------------------------- parameter init (torch layout) ------------------
def _linear_init(key, in_dim, out_dim):
    k1, k2 = jax.random.split(key)
    bound = 1.0 / math.sqrt(in_dim)
    w = jax.random.uniform(k1, (out_dim, in_dim), jnp.float32, -bound, bound)
    b = jax.random.uniform(k2, (out_dim,), jnp.float32, -bound, bound)
    return w, b


def _normed_linear_init(key, in_dim, out_dim, scale=0.1):
    w, b = _linear_init(key, in_dim, out_dim)
    w = w * scale / jnp.linalg.norm(w, axis=1, keepdims=True)
    return w, b


def init_params(key, n_features, n_hidden, n_handcrafted, n_action):
    H, A = n_hidden, n_action
    ks = jax.random.split(key, 12)
    bound = 1.0 / math.sqrt(H)
    p = {
        "w_ih": jax.random.uniform(ks[0], (4 * H, n_features), jnp.float32, -bound, bound),
        "w_hh": jax.random.uniform(ks[1], (4 * H, H), jnp.float32, -bound, bound),
        "b_ih": jax.random.uniform(ks[2], (4 * H,), jnp.float32, -bound, bound),
        "b_hh": jax.random.uniform(ks[3], (4 * H,), jnp.float32, -bound, bound),
    }
    FE = H + n_handcrafted
    LH = 2 * FE
    p["w1"], p["b1"] = _linear_init(ks[4], FE, LH)
    p["w2"], p["b2"] = _linear_init(ks[5], LH, LH)
    p["w3"], p["b3"] = _linear_init(ks[6], LH, LH)
    p["wmu"], p["bmu"] = _normed_linear_init(ks[7], LH, A)
    p["wsig"], p["bsig"] = _normed_linear_init(ks[8], LH, A)
    p["gw1"], p["gb1"] = _linear_init(ks[9], H + A, H)
    p["wcmu"], p["bcmu"] = _normed_linear_init(ks[10], H, A)
    p["wcsig"], p["bcsig"] = _normed_linear_init(ks[11], H, A)
    return p


# ----------------------------- pure-JAX reference -----------------------------
def actor_reference(s, feat, old_action, p, z):
    hp = jax.lax.Precision.HIGHEST
    B, T, _ = s.shape
    H = p["w_hh"].shape[1]
    w_ih, w_hh = p["w_ih"].T, p["w_hh"].T
    b = (p["b_ih"] + p["b_hh"])[None, :]
    h = jnp.zeros((B, H), jnp.float32)
    c = jnp.zeros((B, H), jnp.float32)
    for t in range(T):
        g = jnp.dot(s[:, t, :], w_ih, precision=hp) + jnp.dot(h, w_hh, precision=hp) + b
        i = jax.nn.sigmoid(g[:, :H]); f = jax.nn.sigmoid(g[:, H:2 * H])
        gg = jnp.tanh(g[:, 2 * H:3 * H]); o = jax.nn.sigmoid(g[:, 3 * H:4 * H])
        c = f * c + i * gg
        h = o * jnp.tanh(c)
    ext = jnp.concatenate([h, feat[:, 0, :]], axis=1)
    fc1 = jax.nn.relu(jnp.dot(ext, p["w1"].T, precision=hp) + p["b1"])
    fc2 = jax.nn.relu(jnp.dot(fc1, p["w2"].T, precision=hp) + p["b2"])
    fc3 = jax.nn.relu(jnp.dot(fc2, p["w3"].T, precision=hp) + p["b3"])
    mu = jnp.tanh(jnp.dot(fc3, p["wmu"].T, precision=hp) + p["bmu"])
    sigma = jax.nn.sigmoid(jnp.dot(fc3, p["wsig"].T, precision=hp) + p["bsig"] + 1e-5)
    action = jnp.clip(mu + sigma * z[0], -1.0, 1.0)
    a0 = action[0:1, :]
    logp = (-((a0 - mu) ** 2) / (2.0 * sigma * sigma)
            - jnp.log(sigma) - 0.5 * math.log(2.0 * math.pi))
    csa = jnp.concatenate([h, old_action], axis=1)
    g1 = jax.nn.relu(jnp.dot(csa, p["gw1"].T, precision=hp) + p["gb1"])
    cgm_mu = jnp.tanh(jnp.dot(g1, p["wcmu"].T, precision=hp) + p["bcmu"])
    cgm_sigma = jax.nn.softplus(jnp.dot(g1, p["wcsig"].T, precision=hp) + p["bcsig"] + 1e-5)
    cgm = jnp.clip(cgm_mu + cgm_sigma * z[1], -1.0, 1.0)
    return mu, sigma, action, logp, cgm_mu, cgm_sigma, cgm


# ----------------------------- main --------------------------------------------
if __name__ == "__main__":
    B, T = 2, 8                      # batch, feature_history (sequence length)
    n_features, n_hidden, n_handcrafted, n_action = 3, 32, 4, 1

    key = jax.random.PRNGKey(0)
    k_s, k_f, k_a, k_p, k_z = jax.random.split(key, 5)
    s = jax.random.normal(k_s, (B, T, n_features), jnp.float32)
    feat = jax.random.normal(k_f, (B, 1, n_handcrafted), jnp.float32)
    old_action = jax.random.uniform(k_a, (B, n_action), jnp.float32, -1.0, 1.0)
    z = jax.random.normal(k_z, (2,), jnp.float32)     # [z_action, z_cgm]

    params = init_params(k_p, n_features, n_hidden, n_handcrafted, n_action)
    w32, wbf = pack_weights(params, n_features=n_features, n_hidden=n_hidden,
                            n_handcrafted=n_handcrafted, n_action=n_action)

    outs = jax.block_until_ready(
        actor_forward(s, feat, old_action, w32, wbf, z, n_hidden=n_hidden))
    refs = actor_reference(s, feat, old_action, params, z)

    # Tolerances account for bf16 quantization of the feed-forward MXU operands
    # (LSTM kept f32); log_prob has ~10x sensitivity to mu/sigma via 1/sigma^2.
    names = ("mu", "sigma", "action", "log_prob", "cgm_mu", "cgm_sigma", "cgm")
    tols = (1.5e-2, 1.5e-2, 1.5e-2, 6e-2, 1.5e-2, 1.5e-2, 1.5e-2)
    for name, tol, got, want in zip(names, tols, outs, refs):
        assert got.shape == (B, n_action)
        err = float(jnp.max(jnp.abs(got - want)))
        assert err < tol, f"{name}: mismatch vs reference: {err} > {tol}"

    print("KERNEL_OK")
</pallas_src>

<mosaic_0001>
module attributes {stable_mosaic.version = 11 : i64} {
  func.func @kernel(%arg0: memref<72x8xf32, #tpu.memory_space<vmem>>, %arg1: memref<48x128xf32, #tpu.memory_space<vmem>>, %arg2: memref<432x128xbf16, #tpu.memory_space<vmem>>, %arg3: memref<2xf32, #tpu.memory_space<smem>>, %arg4: memref<8x128xf32, #tpu.memory_space<vmem>>) attributes {dimension_semantics = [], scalar_prefetch = 0 : i64, scratch_operands = 0 : i64, tpu.core_type = #tpu.core_type<tc>} {
    %c0 = arith.constant 0 : index
    %c0_0 = arith.constant 0 : index
    %0 = vector.load %arg1[%c0, %c0_0] : memref<48x128xf32, #tpu.memory_space<vmem>>, vector<8x128xf32>
    %c8 = arith.constant 8 : index
    %c0_1 = arith.constant 0 : index
    %1 = vector.load %arg1[%c8, %c0_1] : memref<48x128xf32, #tpu.memory_space<vmem>>, vector<32x128xf32>
    %c40 = arith.constant 40 : index
    %c0_2 = arith.constant 0 : index
    %2 = vector.load %arg1[%c40, %c0_2] : memref<48x128xf32, #tpu.memory_space<vmem>>, vector<8x128xf32>
    %3 = vector.extract_strided_slice %2 {offsets = [0, 0], sizes = [1, 128], strides = [1, 1]} : vector<8x128xf32> to vector<1x128xf32>
    %4 = vector.extract_strided_slice %2 {offsets = [1, 0], sizes = [1, 128], strides = [1, 1]} : vector<8x128xf32> to vector<1x128xf32>
    %5 = vector.extract_strided_slice %2 {offsets = [2, 0], sizes = [1, 128], strides = [1, 1]} : vector<8x128xf32> to vector<1x128xf32>
    %6 = vector.extract_strided_slice %2 {offsets = [3, 0], sizes = [1, 128], strides = [1, 1]} : vector<8x128xf32> to vector<1x128xf32>
    %7 = vector.extract_strided_slice %2 {offsets = [4, 0], sizes = [1, 128], strides = [1, 1]} : vector<8x128xf32> to vector<1x128xf32>
    %8 = vector.extract_strided_slice %2 {offsets = [5, 0], sizes = [1, 128], strides = [1, 1]} : vector<8x128xf32> to vector<1x128xf32>
    %c0_3 = arith.constant 0 : index
    %c0_4 = arith.constant 0 : index
    %9 = vector.load %arg0[%c0_3, %c0_4] : memref<72x8xf32, #tpu.memory_space<vmem>>, vector<64x8xf32>
    %cst = arith.constant dense<0.000000e+00> : vector<64x128xf32>
    %10 = tpu.matmul %9, %0, %cst {dimension_numbers = #tpu.dot_dimension_numbers<[1], [0], [0], [1], [0, 0, 1, 1], [], []>} : vector<64x8xf32>, vector<8x128xf32>, vector<64x128xf32> -> vector<64x128xf32>
    %11 = vector.broadcast %3 : vector<1x128xf32> to vector<64x128xf32>
    %12 = arith.addf %10, %11 : vector<64x128xf32>
    %13 = tpu.iota {dimensions = array<i32: 1>} : vector<8x128xi32>
    %c64_i32 = arith.constant 64 : i32
    %14 = vector.broadcast %c64_i32 : i32 to vector<8x128xi32>
    %15 = arith.cmpi sge, %13, %14 : vector<8x128xi32>
    %c96_i32 = arith.constant 96 : i32
    %16 = vector.broadcast %c96_i32 : i32 to vector<8x128xi32>
    %17 = arith.cmpi slt, %13, %16 : vector<8x128xi32>
    %18 = arith.andi %15, %17 : vector<8x128xi1>
    %cst_5 = arith.constant 0.000000e+00 : f32
    %19 = vector.broadcast %cst_5 : f32 to vector<8x32xf32>
    %cst_6 = arith.constant 0.000000e+00 : f32
    %20 = vector.broadcast %cst_6 : f32 to vector<8x32xf32>
    %21 = vector.extract_strided_slice %12 {offsets = [0, 0], sizes = [8, 128], strides = [1, 1]} : vector<64x128xf32> to vector<8x128xf32>
    %cst_7 = arith.constant dense<0.000000e+00> : vector<8x128xf32>
    %22 = tpu.matmul %19, %1, %cst_7 {dimension_numbers = #tpu.dot_dimension_numbers<[1], [0], [0], [1], [0, 0, 1, 1], [], []>} : vector<8x32xf32>, vector<32x128xf32>, vector<8x128xf32> -> vector<8x128xf32>
    %23 = arith.addf %21, %22 : vector<8x128xf32>
    %24 = arith.negf %23 : vector<8x128xf32>
    %25 = math.exp %24 : vector<8x128xf32>
    %cst_8 = arith.constant 1.000000e+00 : f32
    %26 = vector.broadcast %cst_8 : f32 to vector<8x128xf32>
    %27 = arith.addf %26, %25 : vector<8x128xf32>
    %28 = arith.divf %26, %27 : vector<8x128xf32>
    %29 = math.tanh %23 : vector<8x128xf32>
    %30 = arith.select %18, %29, %28 : vector<8x128xi1>, vector<8x128xf32>
    %31 = vector.extract_strided_slice %30 {offsets = [0, 0], sizes = [8, 32], strides = [1, 1]} : vector<8x128xf32> to vector<8x32xf32>
    %32 = vector.extract_strided_slice %30 {offsets = [0, 32], sizes = [8, 32], strides = [1, 1]} : vector<8x128xf32> to vector<8x32xf32>
    %33 = vector.extract_strided_slice %30 {offsets = [0, 64], sizes = [8, 32], strides = [1, 1]} : vector<8x128xf32> to vector<8x32xf32>
    %34 = vector.extract_strided_slice %30 {offsets = [0, 96], sizes = [8, 32], strides = [1, 1]} : vector<8x128xf32> to vector<8x32xf32>
    %35 = arith.mulf %32, %20 : vector<8x32xf32>
    %36 = arith.mulf %31, %33 : vector<8x32xf32>
    %37 = arith.addf %35, %36 : vector<8x32xf32>
    %38 = math.tanh %37 : vector<8x32xf32>
    %39 = arith.mulf %34, %38 : vector<8x32xf32>
    %40 = vector.extract_strided_slice %12 {offsets = [8, 0], sizes = [8, 128], strides = [1, 1]} : vector<64x128xf32> to vector<8x128xf32>
    %cst_9 = arith.constant dense<0.000000e+00> : vector<8x128xf32>
    %41 = tpu.matmul %39, %1, %cst_9 {dimension_numbers = #tpu.dot_dimension_numbers<[1], [0], [0], [1], [0, 0, 1, 1], [], []>} : vector<8x32xf32>, vector<32x128xf32>, vector<8x128xf32> -> vector<8x128xf32>
    %42 = arith.addf %40, %41 : vector<8x128xf32>
    %43 = arith.negf %42 : vector<8x128xf32>
    %44 = math.exp %43 : vector<8x128xf32>
    %cst_10 = arith.constant 1.000000e+00 : f32
    %45 = vector.broadcast %cst_10 : f32 to vector<8x128xf32>
    %46 = arith.addf %45, %44 : vector<8x128xf32>
    %47 = arith.divf %45, %46 : vector<8x128xf32>
    %48 = math.tanh %42 : vector<8x128xf32>
    %49 = arith.select %18, %48, %47 : vector<8x128xi1>, vector<8x128xf32>
    %50 = vector.extract_strided_slice %49 {offsets = [0, 0], sizes = [8, 32], strides = [1, 1]} : vector<8x128xf32> to vector<8x32xf32>
    %51 = vector.extract_strided_slice %49 {offsets = [0, 32], sizes = [8, 32], strides = [1, 1]} : vector<8x128xf32> to vector<8x32xf32>
    %52 = vector.extract_strided_slice %49 {offsets = [0, 64], sizes = [8, 32], strides = [1, 1]} : vector<8x128xf32> to vector<8x32xf32>
    %53 = vector.extract_strided_slice %49 {offsets = [0, 96], sizes = [8, 32], strides = [1, 1]} : vector<8x128xf32> to vector<8x32xf32>
    %54 = arith.mulf %51, %37 : vector<8x32xf32>
    %55 = arith.mulf %50, %52 : vector<8x32xf32>
    %56 = arith.addf %54, %55 : vector<8x32xf32>
    %57 = math.tanh %56 : vector<8x32xf32>
    %58 = arith.mulf %53, %57 : vector<8x32xf32>
    %59 = vector.extract_strided_slice %12 {offsets = [16, 0], sizes = [8, 128], strides = [1, 1]} : vector<64x128xf32> to vector<8x128xf32>
    %cst_11 = arith.constant dense<0.000000e+00> : vector<8x128xf32>
    %60 = tpu.matmul %58, %1, %cst_11 {dimension_numbers = #tpu.dot_dimension_numbers<[1], [0], [0], [1], [0, 0, 1, 1], [], []>} : vector<8x32xf32>, vector<32x128xf32>, vector<8x128xf32> -> vector<8x128xf32>
    %61 = arith.addf %59, %60 : vector<8x128xf32>
    %62 = arith.negf %61 : vector<8x128xf32>
    %63 = math.exp %62 : vector<8x128xf32>
    %cst_12 = arith.constant 1.000000e+00 : f32
    %64 = vector.broadcast %cst_12 : f32 to vector<8x128xf32>
    %65 = arith.addf %64, %63 : vector<8x128xf32>
    %66 = arith.divf %64, %65 : vector<8x128xf32>
    %67 = math.tanh %61 : vector<8x128xf32>
    %68 = arith.select %18, %67, %66 : vector<8x128xi1>, vector<8x128xf32>
    %69 = vector.extract_strided_slice %68 {offsets = [0, 0], sizes = [8, 32], strides = [1, 1]} : vector<8x128xf32> to vector<8x32xf32>
    %70 = vector.extract_strided_slice %68 {offsets = [0, 32], sizes = [8, 32], strides = [1, 1]} : vector<8x128xf32> to vector<8x32xf32>
    %71 = vector.extract_strided_slice %68 {offsets = [0, 64], sizes = [8, 32], strides = [1, 1]} : vector<8x128xf32> to vector<8x32xf32>
    %72 = vector.extract_strided_slice %68 {offsets = [0, 96], sizes = [8, 32], strides = [1, 1]} : vector<8x128xf32> to vector<8x32xf32>
    %73 = arith.mulf %70, %56 : vector<8x32xf32>
    %74 = arith.mulf %69, %71 : vector<8x32xf32>
    %75 = arith.addf %73, %74 : vector<8x32xf32>
    %76 = math.tanh %75 : vector<8x32xf32>
    %77 = arith.mulf %72, %76 : vector<8x32xf32>
    %78 = vector.extract_strided_slice %12 {offsets = [24, 0], sizes = [8, 128], strides = [1, 1]} : vector<64x128xf32> to vector<8x128xf32>
    %cst_13 = arith.constant dense<0.000000e+00> : vector<8x128xf32>
    %79 = tpu.matmul %77, %1, %cst_13 {dimension_numbers = #tpu.dot_dimension_numbers<[1], [0], [0], [1], [0, 0, 1, 1], [], []>} : vector<8x32xf32>, vector<32x128xf32>, vector<8x128xf32> -> vector<8x128xf32>
    %80 = arith.addf %78, %79 : vector<8x128xf32>
    %81 = arith.negf %80 : vector<8x128xf32>
    %82 = math.exp %81 : vector<8x128xf32>
    %cst_14 = arith.constant 1.000000e+00 : f32
    %83 = vector.broadcast %cst_14 : f32 to vector<8x128xf32>
    %84 = arith.addf %83, %82 : vector<8x128xf32>
    %85 = arith.divf %83, %84 : vector<8x128xf32>
    %86 = math.tanh %80 : vector<8x128xf32>
    %87 = arith.select %18, %86, %85 : vector<8x128xi1>, vector<8x128xf32>
    %88 = vector.extract_strided_slice %87 {offsets = [0, 0], sizes = [8, 32], strides = [1, 1]} : vector<8x128xf32> to vector<8x32xf32>
    %89 = vector.extract_strided_slice %87 {offsets = [0, 32], sizes = [8, 32], strides = [1, 1]} : vector<8x128xf32> to vector<8x32xf32>
    %90 = vector.extract_strided_slice %87 {offsets = [0, 64], sizes = [8, 32], strides = [1, 1]} : vector<8x128xf32> to vector<8x32xf32>
    %91 = vector.extract_strided_slice %87 {offsets = [0, 96], sizes = [8, 32], strides = [1, 1]} : vector<8x128xf32> to vector<8x32xf32>
    %92 = arith.mulf %89, %75 : vector<8x32xf32>
    %93 = arith.mulf %88, %90 : vector<8x32xf32>
    %94 = arith.addf %92, %93 : vector<8x32xf32>
    %95 = math.tanh %94 : vector<8x32xf32>
    %96 = arith.mulf %91, %95 : vector<8x32xf32>
    %97 = vector.extract_strided_slice %12 {offsets = [32, 0], sizes = [8, 128], strides = [1, 1]} : vector<64x128xf32> to vector<8x128xf32>
    %cst_15 = arith.constant dense<0.000000e+00> : vector<8x128xf32>
    %98 = tpu.matmul %96, %1, %cst_15 {dimension_numbers = #tpu.dot_dimension_numbers<[1], [0], [0], [1], [0, 0, 1, 1], [], []>} : vector<8x32xf32>, vector<32x128xf32>, vector<8x128xf32> -> vector<8x128xf32>
    %99 = arith.addf %97, %98 : vector<8x128xf32>
    %100 = arith.negf %99 : vector<8x128xf32>
    %101 = math.exp %100 : vector<8x128xf32>
    %cst_16 = arith.constant 1.000000e+00 : f32
    %102 = vector.broadcast %cst_16 : f32 to vector<8x128xf32>
    %103 = arith.addf %102, %101 : vector<8x128xf32>
    %104 = arith.divf %102, %103 : vector<8x128xf32>
    %105 = math.tanh %99 : vector<8x128xf32>
    %106 = arith.select %18, %105, %104 : vector<8x128xi1>, vector<8x128xf32>
    %107 = vector.extract_strided_slice %106 {offsets = [0, 0], sizes = [8, 32], strides = [1, 1]} : vector<8x128xf32> to vector<8x32xf32>
    %108 = vector.extract_strided_slice %106 {offsets = [0, 32], sizes = [8, 32], strides = [1, 1]} : vector<8x128xf32> to vector<8x32xf32>
    %109 = vector.extract_strided_slice %106 {offsets = [0, 64], sizes = [8, 32], strides = [1, 1]} : vector<8x128xf32> to vector<8x32xf32>
    %110 = vector.extract_strided_slice %106 {offsets = [0, 96], sizes = [8, 32], strides = [1, 1]} : vector<8x128xf32> to vector<8x32xf32>
    %111 = arith.mulf %108, %94 : vector<8x32xf32>
    %112 = arith.mulf %107, %109 : vector<8x32xf32>
    %113 = arith.addf %111, %112 : vector<8x32xf32>
    %114 = math.tanh %113 : vector<8x32xf32>
    %115 = arith.mulf %110, %114 : vector<8x32xf32>
    %116 = vector.extract_strided_slice %12 {offsets = [40, 0], sizes = [8, 128], strides = [1, 1]} : vector<64x128xf32> to vector<8x128xf32>
    %cst_17 = arith.constant dense<0.000000e+00> : vector<8x128xf32>
    %117 = tpu.matmul %115, %1, %cst_17 {dimension_numbers = #tpu.dot_dimension_numbers<[1], [0], [0], [1], [0, 0, 1, 1], [], []>} : vector<8x32xf32>, vector<32x128xf32>, vector<8x128xf32> -> vector<8x128xf32>
    %118 = arith.addf %116, %117 : vector<8x128xf32>
    %119 = arith.negf %118 : vector<8x128xf32>
    %120 = math.exp %119 : vector<8x128xf32>
    %cst_18 = arith.constant 1.000000e+00 : f32
    %121 = vector.broadcast %cst_18 : f32 to vector<8x128xf32>
    %122 = arith.addf %121, %120 : vector<8x128xf32>
    %123 = arith.divf %121, %122 : vector<8x128xf32>
    %124 = math.tanh %118 : vector<8x128xf32>
    %125 = arith.select %18, %124, %123 : vector<8x128xi1>, vector<8x128xf32>
    %126 = vector.extract_strided_slice %125 {offsets = [0, 0], sizes = [8, 32], strides = [1, 1]} : vector<8x128xf32> to vector<8x32xf32>
    %127 = vector.extract_strided_slice %125 {offsets = [0, 32], sizes = [8, 32], strides = [1, 1]} : vector<8x128xf32> to vector<8x32xf32>
    %128 = vector.extract_strided_slice %125 {offsets = [0, 64], sizes = [8, 32], strides = [1, 1]} : vector<8x128xf32> to vector<8x32xf32>
    %129 = vector.extract_strided_slice %125 {offsets = [0, 96], sizes = [8, 32], strides = [1, 1]} : vector<8x128xf32> to vector<8x32xf32>
    %130 = arith.mulf %127, %113 : vector<8x32xf32>
    %131 = arith.mulf %126, %128 : vector<8x32xf32>
    %132 = arith.addf %130, %131 : vector<8x32xf32>
    %133 = math.tanh %132 : vector<8x32xf32>
    %134 = arith.mulf %129, %133 : vector<8x32xf32>
    %135 = vector.extract_strided_slice %12 {offsets = [48, 0], sizes = [8, 128], strides = [1, 1]} : vector<64x128xf32> to vector<8x128xf32>
    %cst_19 = arith.constant dense<0.000000e+00> : vector<8x128xf32>
    %136 = tpu.matmul %134, %1, %cst_19 {dimension_numbers = #tpu.dot_dimension_numbers<[1], [0], [0], [1], [0, 0, 1, 1], [], []>} : vector<8x32xf32>, vector<32x128xf32>, vector<8x128xf32> -> vector<8x128xf32>
    %137 = arith.addf %135, %136 : vector<8x128xf32>
    %138 = arith.negf %137 : vector<8x128xf32>
    %139 = math.exp %138 : vector<8x128xf32>
    %cst_20 = arith.constant 1.000000e+00 : f32
    %140 = vector.broadcast %cst_20 : f32 to vector<8x128xf32>
    %141 = arith.addf %140, %139 : vector<8x128xf32>
    %142 = arith.divf %140, %141 : vector<8x128xf32>
    %143 = math.tanh %137 : vector<8x128xf32>
    %144 = arith.select %18, %143, %142 : vector<8x128xi1>, vector<8x128xf32>
    %145 = vector.extract_strided_slice %144 {offsets = [0, 0], sizes = [8, 32], strides = [1, 1]} : vector<8x128xf32> to vector<8x32xf32>
    %146 = vector.extract_strided_slice %144 {offsets = [0, 32], sizes = [8, 32], strides = [1, 1]} : vector<8x128xf32> to vector<8x32xf32>
    %147 = vector.extract_strided_slice %144 {offsets = [0, 64], sizes = [8, 32], strides = [1, 1]} : vector<8x128xf32> to vector<8x32xf32>
    %148 = vector.extract_strided_slice %144 {offsets = [0, 96], sizes = [8, 32], strides = [1, 1]} : vector<8x128xf32> to vector<8x32xf32>
    %149 = arith.mulf %146, %132 : vector<8x32xf32>
    %150 = arith.mulf %145, %147 : vector<8x32xf32>
    %151 = arith.addf %149, %150 : vector<8x32xf32>
    %152 = math.tanh %151 : vector<8x32xf32>
    %153 = arith.mulf %148, %152 : vector<8x32xf32>
    %154 = vector.extract_strided_slice %12 {offsets = [56, 0], sizes = [8, 128], strides = [1, 1]} : vector<64x128xf32> to vector<8x128xf32>
    %cst_21 = arith.constant dense<0.000000e+00> : vector<8x128xf32>
    %155 = tpu.matmul %153, %1, %cst_21 {dimension_numbers = #tpu.dot_dimension_numbers<[1], [0], [0], [1], [0, 0, 1, 1], [], []>} : vector<8x32xf32>, vector<32x128xf32>, vector<8x128xf32> -> vector<8x128xf32>
    %156 = arith.addf %154, %155 : vector<8x128xf32>
    %157 = arith.negf %156 : vector<8x128xf32>
    %158 = math.exp %157 : vector<8x128xf32>
    %cst_22 = arith.constant 1.000000e+00 : f32
    %159 = vector.broadcast %cst_22 : f32 to vector<8x128xf32>
    %160 = arith.addf %159, %158 : vector<8x128xf32>
    %161 = arith.divf %159, %160 : vector<8x128xf32>
    %162 = math.tanh %156 : vector<8x128xf32>
    %163 = arith.select %18, %162, %161 : vector<8x128xi1>, vector<8x128xf32>
    %164 = vector.extract_strided_slice %163 {offsets = [0, 0], sizes = [8, 32], strides = [1, 1]} : vector<8x128xf32> to vector<8x32xf32>
    %165 = vector.extract_strided_slice %163 {offsets = [0, 32], sizes = [8, 32], strides = [1, 1]} : vector<8x128xf32> to vector<8x32xf32>
    %166 = vector.extract_strided_slice %163 {offsets = [0, 64], sizes = [8, 32], strides = [1, 1]} : vector<8x128xf32> to vector<8x32xf32>
    %167 = vector.extract_strided_slice %163 {offsets = [0, 96], sizes = [8, 32], strides = [1, 1]} : vector<8x128xf32> to vector<8x32xf32>
    %168 = arith.mulf %165, %151 : vector<8x32xf32>
    %169 = arith.mulf %164, %166 : vector<8x32xf32>
    %170 = arith.addf %168, %169 : vector<8x32xf32>
    %171 = math.tanh %170 : vector<8x32xf32>
    %172 = arith.mulf %167, %171 : vector<8x32xf32>
    %c64 = arith.constant 64 : index
    %c0_23 = arith.constant 0 : index
    %173 = vector.load %arg0[%c64, %c0_23] : memref<72x8xf32, #tpu.memory_space<vmem>>, vector<8x8xf32>
    %c0_24 = arith.constant 0 : index
    %c0_25 = arith.constant 0 : index
    %174 = vector.load %arg2[%c0_24, %c0_25] : memref<432x128xbf16, #tpu.memory_space<vmem>>, vector<32x128xbf16>
    %c32 = arith.constant 32 : index
    %c0_26 = arith.constant 0 : index
    %175 = vector.load %arg2[%c32, %c0_26] : memref<432x128xbf16, #tpu.memory_space<vmem>>, vector<8x128xbf16>
    %c48 = arith.constant 48 : index
    %c0_27 = arith.constant 0 : index
    %176 = vector.load %arg2[%c48, %c0_27] : memref<432x128xbf16, #tpu.memory_space<vmem>>, vector<128x128xbf16>
    %c176 = arith.constant 176 : index
    %c0_28 = arith.constant 0 : index
    %177 = vector.load %arg2[%c176, %c0_28] : memref<432x128xbf16, #tpu.memory_space<vmem>>, vector<128x128xbf16>
    %c304 = arith.constant 304 : index
    %c0_29 = arith.constant 0 : index
    %178 = vector.load %arg2[%c304, %c0_29] : memref<432x128xbf16, #tpu.memory_space<vmem>>, vector<128x128xbf16>
    %179 = arith.truncf %172 : vector<8x32xf32> to vector<8x32xbf16>
    %cst_30 = arith.constant dense<0.000000e+00> : vector<8x128xf32>
    %180 = tpu.matmul %179, %174, %cst_30 {dimension_numbers = #tpu.dot_dimension_numbers<[1], [0], [0], [1], [0, 0, 1, 1], [], []>} : vector<8x32xbf16>, vector<32x128xbf16>, vector<8x128xf32> -> vector<8x128xf32>
    %181 = arith.truncf %173 : vector<8x8xf32> to vector<8x8xbf16>
    %cst_31 = arith.constant dense<0.000000e+00> : vector<8x128xf32>
    %182 = tpu.matmul %181, %175, %cst_31 {dimension_numbers = #tpu.dot_dimension_numbers<[1], [0], [0], [1], [0, 0, 1, 1], [], []>} : vector<8x8xbf16>, vector<8x128xbf16>, vector<8x128xf32> -> vector<8x128xf32>
    %183 = arith.addf %180, %182 : vector<8x128xf32>
    %184 = vector.broadcast %4 : vector<1x128xf32> to vector<8x128xf32>
    %185 = arith.addf %183, %184 : vector<8x128xf32>
    %cst_32 = arith.constant 0.000000e+00 : f32
    %186 = vector.broadcast %cst_32 : f32 to vector<8x128xf32>
    %187 = arith.maximumf %185, %186 : vector<8x128xf32>
    %188 = arith.truncf %187 : vector<8x128xf32> to vector<8x128xbf16>
    %cst_33 = arith.constant dense<0.000000e+00> : vector<8x128xf32>
    %189 = tpu.matmul %188, %176, %cst_33 {dimension_numbers = #tpu.dot_dimension_numbers<[1], [0], [0], [1], [0, 0, 1, 1], [], []>} : vector<8x128xbf16>, vector<128x128xbf16>, vector<8x128xf32> -> vector<8x128xf32>
    %190 = vector.broadcast %5 : vector<1x128xf32> to vector<8x128xf32>
    %191 = arith.addf %189, %190 : vector<8x128xf32>
    %cst_34 = arith.constant 0.000000e+00 : f32
    %192 = vector.broadcast %cst_34 : f32 to vector<8x128xf32>
    %193 = arith.maximumf %191, %192 : vector<8x128xf32>
    %194 = arith.truncf %193 : vector<8x128xf32> to vector<8x128xbf16>
    %cst_35 = arith.constant dense<0.000000e+00> : vector<8x128xf32>
    %195 = tpu.matmul %194, %177, %cst_35 {dimension_numbers = #tpu.dot_dimension_numbers<[1], [0], [0], [1], [0, 0, 1, 1], [], []>} : vector<8x128xbf16>, vector<128x128xbf16>, vector<8x128xf32> -> vector<8x128xf32>
    %196 = vector.broadcast %6 : vector<1x128xf32> to vector<8x128xf32>
    %197 = arith.addf %195, %196 : vector<8x128xf32>
    %cst_36 = arith.constant 0.000000e+00 : f32
    %198 = vector.broadcast %cst_36 : f32 to vector<8x128xf32>
    %199 = arith.maximumf %197, %198 : vector<8x128xf32>
    %200 = arith.truncf %199 : vector<8x128xf32> to vector<8x128xbf16>
    %cst_37 = arith.constant dense<0.000000e+00> : vector<8x128xf32>
    %201 = tpu.matmul %200, %178, %cst_37 {dimension_numbers = #tpu.dot_dimension_numbers<[1], [0], [0], [1], [0, 0, 1, 1], [], []>} : vector<8x128xbf16>, vector<128x128xbf16>, vector<8x128xf32> -> vector<8x128xf32>
    %202 = vector.broadcast %7 : vector<1x128xf32> to vector<8x128xf32>
    %203 = arith.addf %201, %202 : vector<8x128xf32>
    %204 = arith.truncf %187 : vector<8x128xf32> to vector<8x128xbf16>
    %cst_38 = arith.constant dense<0.000000e+00> : vector<8x128xf32>
    %205 = tpu.matmul %204, %178, %cst_38 {dimension_numbers = #tpu.dot_dimension_numbers<[1], [0], [0], [1], [0, 0, 1, 1], [], []>} : vector<8x128xbf16>, vector<128x128xbf16>, vector<8x128xf32> -> vector<8x128xf32>
    %206 = vector.broadcast %8 : vector<1x128xf32> to vector<8x128xf32>
    %207 = arith.addf %205, %206 : vector<8x128xf32>
    %208 = vector.extract_strided_slice %203 {offsets = [0, 0], sizes = [8, 1], strides = [1, 1]} : vector<8x128xf32> to vector<8x1xf32>
    %209 = math.tanh %208 : vector<8x1xf32>
    %210 = vector.extract_strided_slice %203 {offsets = [0, 1], sizes = [8, 1], strides = [1, 1]} : vector<8x128xf32> to vector<8x1xf32>
    %cst_39 = arith.constant 9.99999974E-6 : f32
    %211 = vector.broadcast %cst_39 : f32 to vector<8x1xf32>
    %212 = arith.addf %210, %211 : vector<8x1xf32>
    %213 = arith.negf %212 : vector<8x1xf32>
    %214 = math.exp %213 : vector<8x1xf32>
    %cst_40 = arith.constant 1.000000e+00 : f32
    %215 = vector.broadcast %cst_40 : f32 to vector<8x1xf32>
    %216 = arith.addf %215, %214 : vector<8x1xf32>
    %217 = arith.divf %215, %216 : vector<8x1xf32>
    %218 = vector.extract_strided_slice %207 {offsets = [0, 2], sizes = [8, 1], strides = [1, 1]} : vector<8x128xf32> to vector<8x1xf32>
    %219 = math.tanh %218 : vector<8x1xf32>
    %220 = vector.extract_strided_slice %207 {offsets = [0, 3], sizes = [8, 1], strides = [1, 1]} : vector<8x128xf32> to vector<8x1xf32>
    %cst_41 = arith.constant 9.99999974E-6 : f32
    %221 = vector.broadcast %cst_41 : f32 to vector<8x1xf32>
    %222 = arith.addf %220, %221 : vector<8x1xf32>
    %cst_42 = arith.constant 0.000000e+00 : f32
    %223 = vector.broadcast %cst_42 : f32 to vector<8x1xf32>
    %224 = arith.maximumf %222, %223 : vector<8x1xf32>
    %225 = vector.broadcast %cst_42 : f32 to vector<8x1xf32>
    %226 = arith.subf %222, %225 : vector<8x1xf32>
    %227 = arith.cmpf one, %226, %226 : vector<8x1xf32>
    %228 = vector.broadcast %cst_42 : f32 to vector<8x1xf32>
    %229 = arith.addf %222, %228 : vector<8x1xf32>
    %230 = math.absf %226 : vector<8x1xf32>
    %cst_43 = arith.constant 0.000000e+00 : f32
    %231 = vector.broadcast %cst_43 : f32 to vector<8x1xf32>
    %232 = arith.subf %231, %230 : vector<8x1xf32>
    %233 = math.exp %232 : vector<8x1xf32>
    %234 = math.log1p %233 : vector<8x1xf32>
    %235 = arith.addf %224, %234 : vector<8x1xf32>
    %236 = arith.select %227, %229, %235 : vector<8x1xi1>, vector<8x1xf32>
    %c0_44 = arith.constant 0 : index
    %237 = memref.load %arg3[%c0_44] : memref<2xf32, #tpu.memory_space<smem>>
    %c1 = arith.constant 1 : index
    %238 = memref.load %arg3[%c1] : memref<2xf32, #tpu.memory_space<smem>>
    %239 = vector.broadcast %237 : f32 to vector<8x1xf32>
    %240 = arith.mulf %217, %239 : vector<8x1xf32>
    %241 = arith.addf %209, %240 : vector<8x1xf32>
    %cst_45 = arith.constant -1.000000e+00 : f32
    %cst_46 = arith.constant 1.000000e+00 : f32
    %242 = vector.broadcast %cst_45 : f32 to vector<8x1xf32>
    %243 = arith.maximumf %242, %241 : vector<8x1xf32>
    %244 = vector.broadcast %cst_46 : f32 to vector<8x1xf32>
    %245 = arith.minimumf %244, %243 : vector<8x1xf32>
    %246 = vector.extract_strided_slice %245 {offsets = [0, 0], sizes = [1, 1], strides = [1, 1]} : vector<8x1xf32> to vector<1x1xf32>
    %247 = vector.broadcast %246 : vector<1x1xf32> to vector<8x1xf32>
    %248 = arith.subf %247, %209 : vector<8x1xf32>
    %249 = arith.mulf %248, %248 : vector<8x1xf32>
    %cst_47 = arith.constant 0.000000e+00 : f32
    %250 = vector.broadcast %cst_47 : f32 to vector<8x1xf32>
    %251 = arith.subf %250, %249 : vector<8x1xf32>
    %cst_48 = arith.constant 2.000000e+00 : f32
    %252 = vector.broadcast %cst_48 : f32 to vector<8x1xf32>
    %253 = arith.mulf %252, %217 : vector<8x1xf32>
    %254 = arith.mulf %253, %217 : vector<8x1xf32>
    %255 = arith.divf %251, %254 : vector<8x1xf32>
    %256 = math.log %217 : vector<8x1xf32>
    %257 = arith.subf %255, %256 : vector<8x1xf32>
    %cst_49 = arith.constant 0.918938517 : f32
    %258 = vector.broadcast %cst_49 : f32 to vector<8x1xf32>
    %259 = arith.subf %257, %258 : vector<8x1xf32>
    %260 = vector.broadcast %238 : f32 to vector<8x1xf32>
    %261 = arith.mulf %236, %260 : vector<8x1xf32>
    %262 = arith.addf %219, %261 : vector<8x1xf32>
    %cst_50 = arith.constant -1.000000e+00 : f32
    %cst_51 = arith.constant 1.000000e+00 : f32
    %263 = vector.broadcast %cst_50 : f32 to vector<8x1xf32>
    %264 = arith.maximumf %263, %262 : vector<8x1xf32>
    %265 = vector.broadcast %cst_51 : f32 to vector<8x1xf32>
    %266 = arith.minimumf %265, %264 : vector<8x1xf32>
    %cst_52 = arith.constant 0.000000e+00 : f32
    %267 = vector.broadcast %cst_52 : f32 to vector<8x128xf32>
    %c0_i32 = arith.constant 0 : i32
    %268 = vector.broadcast %c0_i32 : i32 to vector<8x128xi32>
    %269 = arith.cmpi eq, %13, %268 : vector<8x128xi32>
    %cst_53 = arith.constant 0.000000e+00 : f32
    %270 = vector.shape_cast %209 : vector<8x1xf32> to vector<8x1xf32>
    %271 = vector.broadcast %270 : vector<8x1xf32> to vector<8x128xf32>
    %272 = vector.broadcast %cst_53 : f32 to vector<8x128xf32>
    %273 = arith.select %269, %271, %272 : vector<8x128xi1>, vector<8x128xf32>
    %274 = arith.addf %267, %273 : vector<8x128xf32>
    %c1_i32 = arith.constant 1 : i32
    %275 = vector.broadcast %c1_i32 : i32 to vector<8x128xi32>
    %276 = arith.cmpi eq, %13, %275 : vector<8x128xi32>
    %cst_54 = arith.constant 0.000000e+00 : f32
    %277 = vector.shape_cast %217 : vector<8x1xf32> to vector<8x1xf32>
    %278 = vector.broadcast %277 : vector<8x1xf32> to vector<8x128xf32>
    %279 = vector.broadcast %cst_54 : f32 to vector<8x128xf32>
    %280 = arith.select %276, %278, %279 : vector<8x128xi1>, vector<8x128xf32>
    %281 = arith.addf %274, %280 : vector<8x128xf32>
    %c2_i32 = arith.constant 2 : i32
    %282 = vector.broadcast %c2_i32 : i32 to vector<8x128xi32>
    %283 = arith.cmpi eq, %13, %282 : vector<8x128xi32>
    %cst_55 = arith.constant 0.000000e+00 : f32
    %284 = vector.shape_cast %245 : vector<8x1xf32> to vector<8x1xf32>
    %285 = vector.broadcast %284 : vector<8x1xf32> to vector<8x128xf32>
    %286 = vector.broadcast %cst_55 : f32 to vector<8x128xf32>
    %287 = arith.select %283, %285, %286 : vector<8x128xi1>, vector<8x128xf32>
    %288 = arith.addf %281, %287 : vector<8x128xf32>
    %c3_i32 = arith.constant 3 : i32
    %289 = vector.broadcast %c3_i32 : i32 to vector<8x128xi32>
    %290 = arith.cmpi eq, %13, %289 : vector<8x128xi32>
    %cst_56 = arith.constant 0.000000e+00 : f32
    %291 = vector.shape_cast %259 : vector<8x1xf32> to vector<8x1xf32>
    %292 = vector.broadcast %291 : vector<8x1xf32> to vector<8x128xf32>
    %293 = vector.broadcast %cst_56 : f32 to vector<8x128xf32>
    %294 = arith.select %290, %292, %293 : vector<8x128xi1>, vector<8x128xf32>
    %295 = arith.addf %288, %294 : vector<8x128xf32>
    %c4_i32 = arith.constant 4 : i32
    %296 = vector.broadcast %c4_i32 : i32 to vector<8x128xi32>
    %297 = arith.cmpi eq, %13, %296 : vector<8x128xi32>
    %cst_57 = arith.constant 0.000000e+00 : f32
    %298 = vector.shape_cast %219 : vector<8x1xf32> to vector<8x1xf32>
    %299 = vector.broadcast %298 : vector<8x1xf32> to vector<8x128xf32>
    %300 = vector.broadcast %cst_57 : f32 to vector<8x128xf32>
    %301 = arith.select %297, %299, %300 : vector<8x128xi1>, vector<8x128xf32>
    %302 = arith.addf %295, %301 : vector<8x128xf32>
    %c5_i32 = arith.constant 5 : i32
    %303 = vector.broadcast %c5_i32 : i32 to vector<8x128xi32>
    %304 = arith.cmpi eq, %13, %303 : vector<8x128xi32>
    %cst_58 = arith.constant 0.000000e+00 : f32
    %305 = vector.shape_cast %236 : vector<8x1xf32> to vector<8x1xf32>
    %306 = vector.broadcast %305 : vector<8x1xf32> to vector<8x128xf32>
    %307 = vector.broadcast %cst_58 : f32 to vector<8x128xf32>
    %308 = arith.select %304, %306, %307 : vector<8x128xi1>, vector<8x128xf32>
    %309 = arith.addf %302, %308 : vector<8x128xf32>
    %c6_i32 = arith.constant 6 : i32
    %310 = vector.broadcast %c6_i32 : i32 to vector<8x128xi32>
    %311 = arith.cmpi eq, %13, %310 : vector<8x128xi32>
    %cst_59 = arith.constant 0.000000e+00 : f32
    %312 = vector.shape_cast %266 : vector<8x1xf32> to vector<8x1xf32>
    %313 = vector.broadcast %312 : vector<8x1xf32> to vector<8x128xf32>
    %314 = vector.broadcast %cst_59 : f32 to vector<8x128xf32>
    %315 = arith.select %311, %313, %314 : vector<8x128xi1>, vector<8x128xf32>
    %316 = arith.addf %309, %315 : vector<8x128xf32>
    %c0_60 = arith.constant 0 : index
    %c0_61 = arith.constant 0 : index
    %317 = vector.load %arg4[%c0_60, %c0_61] : memref<8x128xf32, #tpu.memory_space<vmem>>, vector<8x128xf32>
    tpu.vector_store %arg4[%c0_60, %c0_61], %316 {strides = array<i32>} : memref<8x128xf32, #tpu.memory_space<vmem>>, vector<8x128xf32>,
    return
  }
}

</mosaic_0001>

<llo_original>
// kernel: _actor_forward.1
$region0: #{_actor_forward.1}
  #allocation0 [shape = 'u32[]', space=smem, size = 0x4, offset = 0x4, fixed_abs, tag = 'smem constant byte address 0x4 - core index']
  #allocation1 [shape = 'u32[144,128]{1,0:T(1,128)}', space=vmem, size = 0x12000, scoped, tag = 'internal scratch']
  %s0 = inlined_call_operand.vmem [shape: f32[72,8], index: 0, kind: input, shape index: {}]
  %s1 = inlined_call_operand.vmem [shape: f32[48,128], index: 1, kind: input, shape index: {}]
  %s2 = inlined_call_operand.vmem [shape: bf16[432,128], index: 2, kind: input, shape index: {}]
  %s3 = inlined_call_operand.vmem [shape: f32[2], index: 3, kind: input, shape index: {}]
  %s4 = inlined_call_operand.vmem [shape: f32[8,128], index: 4, kind: output, shape index: {}]
  %s5 = sld [smem:[#allocation0]]
  $region30: #{_actor_forward.1} parent=0
    _
  %s7 = ssub.s32 1, %s5
  %s8 = scalar_select 0, %s7, %s5
  $region1: #{_actor_forward.1} parent=0
    #allocation2 [shape = 'u8[512]{0}', space=smem, size = 0x200, scoped, tag = 'input window, operand 3, single buffered']
    #allocation3 [shape = 's32[1]{0}', space=sflag, size = 0x4, scoped, tag = 'scoped memory for _actor_forward.1']
    %9 = vsyncpa [#allocation3], 0
    // Predicated region
    $region2: #{_actor_forward.1} parent=1 // pred_check
      _
    $region3: #{_actor_forward.1} parent=1 // pred_check_branch
      %11 = sbr.rel (0) target = $region5
    $region4: #{_actor_forward.1} parent=1 // pred_region
      _
    $region5: #{_actor_forward.1} parent=1 // pred_fallthru
      _
    // Predicated region
    $region6: #{_actor_forward.1} parent=1 // pred_check
      _
    $region7: #{_actor_forward.1} parent=1 // pred_check_branch
      %13 = sbr.rel (0) target = $region9
    $region8: #{_actor_forward.1} parent=1 // pred_region
      _
    $region9: #{_actor_forward.1} parent=1 // pred_fallthru
      _
    // Predicated region
    $region10: #{_actor_forward.1} parent=1 // pred_check
      _
    $region11: #{_actor_forward.1} parent=1 // pred_check_branch
      %15 = sbr.rel (0) target = $region13
    $region12: #{_actor_forward.1} parent=1 // pred_region
      _
    $region13: #{_actor_forward.1} parent=1 // pred_fallthru
      _
    // Predicated region
    $region14: #{_actor_forward.1} parent=1 // pred_check
      _
    $region15: #{_actor_forward.1} parent=1 // pred_check_branch
      %17 = sbr.rel (0) target = $region17
    $region16: #{_actor_forward.1} parent=1 // pred_region
      %s19 = ssub.s32 16, 16
      %20 = vsyncadd [#allocation3], %s19
      %s22 = sshll.u32 %s3, 4
      %s23 = int_to_ptr.vmem [resolvable:$true] %s22
      %25 = dma.vmem_to_smem %s23, 16, [#allocation2], [#allocation3]
    $region17: #{_actor_forward.1} parent=1 // pred_fallthru
      _
    // Predicated region
    $region18: #{_actor_forward.1} parent=1 // pred_check
      _
    $region19: #{_actor_forward.1} parent=1 // pred_check_branch
      %27 = sbr.rel (0) target = $region21
    $region20: #{_actor_forward.1} parent=1 // pred_region
      %28 = dma.done [#allocation3], 16
    $region21: #{_actor_forward.1} parent=1 // pred_fallthru
      _
    %29 = sfence
    %v31 = vld [vmem:[%s1] sm:$0xff]
    %v32 = vld [vmem:[%s1 + $0x8] sm:$0xff]
    %v33 = vld [vmem:[%s1 + $0x10] sm:$0xff]
    %v34 = vld [vmem:[%s1 + $0x18] sm:$0xff]
    %v35 = vld [vmem:[%s1 + $0x20] sm:$0xff]
    %v36 = vld [vmem:[%s1 + $0x28] sm:$0xff]
    %v37 = vld [vmem:[%s0] sm:$0xff]
    %v38 = vld [vmem:[%s0 + $0x8] sm:$0xff]
    %v39 = vld [vmem:[%s0 + $0x10] sm:$0xff]
    %v40 = vld [vmem:[%s0 + $0x18] sm:$0xff]
    %v41 = vld [vmem:[%s0 + $0x20] sm:$0xff]
    %v42 = vld [vmem:[%s0 + $0x28] sm:$0xff]
    %v43 = vld [vmem:[%s0 + $0x30] sm:$0xff]
    %v44 = vld [vmem:[%s0 + $0x38] sm:$0xff]
    %v45 = vlaneseq
    %v46 = vshrl.u32 %v45, 7
    %v47 = vsub.s32 0, %v46
    %v48 = vrot.slane %v36, %v47
    %vm49 = vcmask 64512
    %v51 = vsel %vm49, %v37, 0
    %v54 = vsel %vm49, %v38, 0
    %v57 = vsel %vm49, %v39, 0
    %v60 = vsel %vm49, %v40, 0
    %v63 = vsel %vm49, %v41, 0
    %v66 = vsel %vm49, %v42, 0
    %v69 = vsel %vm49, %v43, 0
    %v72 = vsel %vm49, %v44, 0
    %74 = vmatprep.subr.mxu0 0.0
    %75 = vmatpush1.msra.mxu0 0.0
    %76 = vmatprep.subr.mxu0 0.0
    %77 = vmatpush1.msra.mxu0 0.0
    %78 = vmatprep.subr.mxu0 0.0
    %79 = vmatpush1.msra.mxu0 0.0
    %80 = vmatprep.subr.mxu0 0.0
    %81 = vmatpush1.msra.mxu0 0.0
    %82 = vmatprep.subr.mxu0 0.0
    %83 = vmatpush1.msra.mxu0 0.0
    %84 = vmatprep.subr.mxu0 0.0
    %85 = vmatpush1.msra.mxu0 0.0
    %86 = vmatprep.subr.mxu0 0.0
    %87 = vmatpush1.msra.mxu0 0.0
    %88 = vmatprep.subr.mxu0 0.0
    %89 = vmatpush1.msra.mxu0 0.0
    %90 = vmatprep.subr.mxu0 0.0
    %91 = vmatpush1.msra.mxu0 0.0
    %92 = vmatprep.subr.mxu0 0.0
    %93 = vmatpush1.msra.mxu0 0.0
    %94 = vmatprep.subr.mxu0 0.0
    %95 = vmatpush1.msra.mxu0 0.0
    %96 = vmatprep.subr.mxu0 0.0
    %97 = vmatpush1.msra.mxu0 0.0
    %98 = vmatprep.subr.mxu0 0.0
    %99 = vmatpush1.msra.mxu0 0.0
    %100 = vmatprep.subr.mxu0 0.0
    %101 = vmatpush1.msra.mxu0 0.0
    %102 = vmatprep.subr.mxu0 0.0
    %103 = vmatpush1.msra.mxu0 0.0
    %104 = vmatprep.subr.mxu0 0.0
    %105 = vmatpush1.msra.mxu0 %v31
    %106 = vmatprep.subr.mxu0 0.0
    %107 = vmatpush2.msra.mxu0 0.0
    %108 = vmatprep.subr.mxu0 0.0
    %109 = vmatpush2.msra.mxu0 0.0
    %110 = vmatprep.subr.mxu0 0.0
    %111 = vmatpush2.msra.mxu0 0.0
    %112 = vmatprep.subr.mxu0 0.0
    %113 = vmatpush2.msra.mxu0 0.0
    %114 = vmatprep.subr.mxu0 0.0
    %115 = vmatpush2.msra.mxu0 0.0
    %116 = vmatprep.subr.mxu0 0.0
    %117 = vmatpush2.msra.mxu0 0.0
    %118 = vmatprep.subr.mxu0 0.0
    %119 = vmatpush2.msra.mxu0 0.0
    %120 = vmatprep.subr.mxu0 0.0
    %121 = vmatpush2.msra.mxu0 0.0
    %122 = vmatprep.subr.mxu0 0.0
    %123 = vmatpush2.msra.mxu0 0.0
    %124 = vmatprep.subr.mxu0 0.0
    %125 = vmatpush2.msra.mxu0 0.0
    %126 = vmatprep.subr.mxu0 0.0
    %127 = vmatpush2.msra.mxu0 0.0
    %128 = vmatprep.subr.mxu0 0.0
    %129 = vmatpush2.msra.mxu0 0.0
    %130 = vmatprep.subr.mxu0 0.0
    %131 = vmatpush2.msra.mxu0 0.0
    %132 = vmatprep.subr.mxu0 0.0
    %133 = vmatpush2.msra.mxu0 0.0
    %134 = vmatprep.subr.mxu0 0.0
    %135 = vmatpush2.msra.mxu0 0.0
    %136 = vmatprep.subr.mxu0 0.0
    %137 = vmatpush2.msra.mxu0 0.0
    %138 = vmatprep.mubr.f32.mxu0 0.0
    %139 = vmatmul.mubr.f32.gmra.mxu0 %v51
    %v140 = vpop.f32.mrf.mxu0
    %v141 = vadd.f32 %v48, %v140
    %v142 = vpop.f32.mrf.mxu0
    %143 = vmatprep.mubr.f32.mxu0 0.0
    %144 = vmatmul.mubr.f32.gmra.mxu0 %v54
    %v145 = vpop.f32.mrf.mxu0
    %v146 = vadd.f32 %v48, %v145
    %v147 = vpop.f32.mrf.mxu0
    %148 = vmatprep.mubr.f32.mxu0 0.0
    %149 = vmatmul.mubr.f32.gmra.mxu0 %v57
    %v150 = vpop.f32.mrf.mxu0
    %v151 = vadd.f32 %v48, %v150
    %v152 = vpop.f32.mrf.mxu0
    %153 = vmatprep.mubr.f32.mxu0 0.0
    %154 = vmatmul.mubr.f32.gmra.mxu0 %v60
    %v155 = vpop.f32.mrf.mxu0
    %v156 = vadd.f32 %v48, %v155
    %v157 = vpop.f32.mrf.mxu0
    %158 = vmatprep.mubr.f32.mxu0 0.0
    %159 = vmatmul.mubr.f32.gmra.mxu0 %v63
    %v160 = vpop.f32.mrf.mxu0
    %v161 = vadd.f32 %v48, %v160
    %v162 = vpop.f32.mrf.mxu0
    %163 = vmatprep.mubr.f32.mxu0 0.0
    %164 = vmatmul.mubr.f32.gmra.mxu0 %v66
    %v165 = vpop.f32.mrf.mxu0
    %v166 = vadd.f32 %v48, %v165
    %v167 = vpop.f32.mrf.mxu0
    %168 = vmatprep.mubr.f32.mxu0 0.0
    %169 = vmatmul.mubr.f32.gmra.mxu0 %v69
    %v170 = vpop.f32.mrf.mxu0
    %v171 = vadd.f32 %v48, %v170
    %v172 = vpop.f32.mrf.mxu0
    %173 = vmatprep.mubr.f32.mxu0 0.0
    %174 = vmatmul.mubr.f32.gmra.mxu0 %v72
    %v175 = vpop.f32.mrf.mxu0
    %v176 = vadd.f32 %v48, %v175
    %v177 = vpop.f32.mrf.mxu0
    %178 = vdwg.mxu0
    %v179 = vlaneseq
    %v180 = vand.u32 %v179, 127
    %vm181 = vcmp.ge.s32.totalorder %v180, 64
    %vm182 = vcmp.lt.s32.totalorder %v180, 96
    %vm183 = vmand %vm181, %vm182
    %vm184 = vcmask 261120
    %v186 = vsel %vm184, 0.0, 0
    %188 = vmatprep.subr.mxu0 0.0
    %189 = vmatpush1.msra.mxu0 0.0
    %190 = vmatprep.subr.mxu0 0.0
    %191 = vmatpush1.msra.mxu0 0.0
    %192 = vmatprep.subr.mxu0 0.0
    %193 = vmatpush1.msra.mxu0 0.0
    %194 = vmatprep.subr.mxu0 0.0
    %195 = vmatpush1.msra.mxu0 0.0
    %196 = vmatprep.subr.mxu0 0.0
    %197 = vmatpush1.msra.mxu0 0.0
    %198 = vmatprep.subr.mxu0 0.0
    %199 = vmatpush1.msra.mxu0 0.0
    %200 = vmatprep.subr.mxu0 0.0
    %201 = vmatpush1.msra.mxu0 0.0
    %202 = vmatprep.subr.mxu0 0.0
    %203 = vmatpush1.msra.mxu0 0.0
    %204 = vmatprep.subr.mxu0 0.0
    %205 = vmatpush1.msra.mxu0 0.0
    %206 = vmatprep.subr.mxu0 0.0
    %207 = vmatpush1.msra.mxu0 0.0
    %208 = vmatprep.subr.mxu0 0.0
    %209 = vmatpush1.msra.mxu0 0.0
    %210 = vmatprep.subr.mxu0 0.0
    %211 = vmatpush1.msra.mxu0 0.0
    %212 = vmatprep.subr.mxu0 0.0
    %213 = vmatpush1.msra.mxu0 %v35
    %214 = vmatprep.subr.mxu0 0.0
    %215 = vmatpush1.msra.mxu0 %v34
    %216 = vmatprep.subr.mxu0 0.0
    %217 = vmatpush1.msra.mxu0 %v33
    %218 = vmatprep.subr.mxu0 0.0
    %219 = vmatpush1.msra.mxu0 %v32
    %220 = vmatprep.subr.mxu0 0.0
    %221 = vmatpush2.msra.mxu0 0.0
    %222 = vmatprep.subr.mxu0 0.0
    %223 = vmatpush2.msra.mxu0 0.0
    %224 = vmatprep.subr.mxu0 0.0
    %225 = vmatpush2.msra.mxu0 0.0
    %226 = vmatprep.subr.mxu0 0.0
    %227 = vmatpush2.msra.mxu0 0.0
    %228 = vmatprep.subr.mxu0 0.0
    %229 = vmatpush2.msra.mxu0 0.0
    %230 = vmatprep.subr.mxu0 0.0
    %231 = vmatpush2.msra.mxu0 0.0
    %232 = vmatprep.subr.mxu0 0.0
    %233 = vmatpush2.msra.mxu0 0.0
    %234 = vmatprep.subr.mxu0 0.0
    %235 = vmatpush2.msra.mxu0 0.0
    %236 = vmatprep.subr.mxu0 0.0
    %237 = vmatpush2.msra.mxu0 0.0
    %238 = vmatprep.subr.mxu0 0.0
    %239 = vmatpush2.msra.mxu0 0.0
    %240 = vmatprep.subr.mxu0 0.0
    %241 = vmatpush2.msra.mxu0 0.0
    %242 = vmatprep.subr.mxu0 0.0
    %243 = vmatpush2.msra.mxu0 0.0
    %244 = vmatprep.subr.mxu0 0.0
    %245 = vmatpush2.msra.mxu0 0.0
    %246 = vmatprep.subr.mxu0 0.0
    %247 = vmatpush2.msra.mxu0 0.0
    %248 = vmatprep.subr.mxu0 0.0
    %249 = vmatpush2.msra.mxu0 0.0
    %250 = vmatprep.subr.mxu0 0.0
    %251 = vmatpush2.msra.mxu0 0.0
    %252 = vmatprep.mubr.f32.mxu0 0.0
    %253 = vmatmul.mubr.f32.gmra.mxu0 %v186
    %v254 = vpop.f32.mrf.mxu0
    %v255 = vadd.f32 0.0, %v254
    %v256 = vpop.f32.mrf.mxu0
    %257 = vdwg.mxu0
    %v258 = vadd.f32 %v141, %v255
    %v259 = vxor.u32 %v258, 2147483648
    %v260 = vmul.f32 %v259, 1.442695
    %v261 = vpow.pop %v260
    %v262 = vadd.f32 %v261, 1.0
    %v263 = vrcp.pop %v262
    %v264 = vmul.f32 1.0, %v263
    %v265 = vtanh.pop %v258
    %v266 = vsel %vm183, %v265, %v264
    %v267 = vmul.f32 %v266, 0.0
    %269 = vrot.lane.b32.xlu0 %v266, 64
    %v270 = vpop.permute.xlu0 %269
    %v272 = vmul.f32 %v266, %v270
    %274 = vrot.lane.b32.xlu0 %v272, 32
    %v275 = vpop.permute.xlu0 %274
    %v277 = vadd.f32 %v267, %v275
    %v278 = vtanh.pop %v277
    %280 = vrot.lane.b32.xlu0 %v278, 64
    %v281 = vpop.permute.xlu0 %280
    %v283 = vmul.f32 %v266, %v281
    %285 = vrot.lane.b32.xlu0 %v283, 32
    %v286 = vpop.permute.xlu0 %285
    %v287 = vsel %vm184, %v286, 0
    %289 = vmatprep.subr.mxu0 0.0
    %290 = vmatpush1.msra.mxu0 0.0
    %291 = vmatprep.subr.mxu0 0.0
    %292 = vmatpush1.msra.mxu0 0.0
    %293 = vmatprep.subr.mxu0 0.0
    %294 = vmatpush1.msra.mxu0 0.0
    %295 = vmatprep.subr.mxu0 0.0
    %296 = vmatpush1.msra.mxu0 0.0
    %297 = vmatprep.subr.mxu0 0.0
    %298 = vmatpush1.msra.mxu0 0.0
    %299 = vmatprep.subr.mxu0 0.0
    %300 = vmatpush1.msra.mxu0 0.0
    %301 = vmatprep.subr.mxu0 0.0
    %302 = vmatpush1.msra.mxu0 0.0
    %303 = vmatprep.subr.mxu0 0.0
    %304 = vmatpush1.msra.mxu0 0.0
    %305 = vmatprep.subr.mxu0 0.0
    %306 = vmatpush1.msra.mxu0 0.0
    %307 = vmatprep.subr.mxu0 0.0
    %308 = vmatpush1.msra.mxu0 0.0
    %309 = vmatprep.subr.mxu0 0.0
    %310 = vmatpush1.msra.mxu0 0.0
    %311 = vmatprep.subr.mxu0 0.0
    %312 = vmatpush1.msra.mxu0 0.0
    %313 = vmatprep.subr.mxu0 0.0
    %314 = vmatpush1.msra.mxu0 %v35
    %315 = vmatprep.subr.mxu0 0.0
    %316 = vmatpush1.msra.mxu0 %v34
    %317 = vmatprep.subr.mxu0 0.0
    %318 = vmatpush1.msra.mxu0 %v33
    %319 = vmatprep.subr.mxu0 0.0
    %320 = vmatpush1.msra.mxu0 %v32
    %321 = vmatprep.subr.mxu0 0.0
    %322 = vmatpush2.msra.mxu0 0.0
    %323 = vmatprep.subr.mxu0 0.0
    %324 = vmatpush2.msra.mxu0 0.0
    %325 = vmatprep.subr.mxu0 0.0
    %326 = vmatpush2.msra.mxu0 0.0
    %327 = vmatprep.subr.mxu0 0.0
    %328 = vmatpush2.msra.mxu0 0.0
    %329 = vmatprep.subr.mxu0 0.0
    %330 = vmatpush2.msra.mxu0 0.0
    %331 = vmatprep.subr.mxu0 0.0
    %332 = vmatpush2.msra.mxu0 0.0
    %333 = vmatprep.subr.mxu0 0.0
    %334 = vmatpush2.msra.mxu0 0.0
    %335 = vmatprep.subr.mxu0 0.0
    %336 = vmatpush2.msra.mxu0 0.0
    %337 = vmatprep.subr.mxu0 0.0
    %338 = vmatpush2.msra.mxu0 0.0
    %339 = vmatprep.subr.mxu0 0.0
    %340 = vmatpush2.msra.mxu0 0.0
    %341 = vmatprep.subr.mxu0 0.0
    %342 = vmatpush2.msra.mxu0 0.0
    %343 = vmatprep.subr.mxu0 0.0
    %344 = vmatpush2.msra.mxu0 0.0
    %345 = vmatprep.subr.mxu0 0.0
    %346 = vmatpush2.msra.mxu0 0.0
    %347 = vmatprep.subr.mxu0 0.0
    %348 = vmatpush2.msra.mxu0 0.0
    %349 = vmatprep.subr.mxu0 0.0
    %350 = vmatpush2.msra.mxu0 0.0
    %351 = vmatprep.subr.mxu0 0.0
    %352 = vmatpush2.msra.mxu0 0.0
    %353 = vmatprep.mubr.f32.mxu0 0.0
    %354 = vmatmul.mubr.f32.gmra.mxu0 %v287
    %v355 = vpop.f32.mrf.mxu0
    %v356 = vadd.f32 0.0, %v355
    %v357 = vpop.f32.mrf.mxu0
    %358 = vdwg.mxu0
    %v359 = vadd.f32 %v146, %v356
    %v360 = vxor.u32 %v359, 2147483648
    %v361 = vmul.f32 %v360, 1.442695
    %v362 = vpow.pop %v361
    %v363 = vadd.f32 %v362, 1.0
    %v364 = vrcp.pop %v363
    %v365 = vmul.f32 1.0, %v364
    %v366 = vtanh.pop %v359
    %v367 = vsel %vm183, %v366, %v365
    %v368 = vmul.f32 %v367, %v277
    %370 = vrot.lane.b32.xlu0 %v367, 64
    %v371 = vpop.permute.xlu0 %370
    %v373 = vmul.f32 %v367, %v371
    %375 = vrot.lane.b32.xlu0 %v373, 32
    %v376 = vpop.permute.xlu0 %375
    %v378 = vadd.f32 %v368, %v376
    %v379 = vtanh.pop %v378
    %381 = vrot.lane.b32.xlu0 %v379, 64
    %v382 = vpop.permute.xlu0 %381
    %v384 = vmul.f32 %v367, %v382
    %386 = vrot.lane.b32.xlu0 %v384, 32
    %v387 = vpop.permute.xlu0 %386
    %v388 = vsel %vm184, %v387, 0
    %390 = vmatprep.subr.mxu0 0.0
    %391 = vmatpush1.msra.mxu0 0.0
    %392 = vmatprep.subr.mxu0 0.0
    %393 = vmatpush1.msra.mxu0 0.0
    %394 = vmatprep.subr.mxu0 0.0
    %395 = vmatpush1.msra.mxu0 0.0
    %396 = vmatprep.subr.mxu0 0.0
    %397 = vmatpush1.msra.mxu0 0.0
    %398 = vmatprep.subr.mxu0 0.0
    %399 = vmatpush1.msra.mxu0 0.0
    %400 = vmatprep.subr.mxu0 0.0
    %401 = vmatpush1.msra.mxu0 0.0
    %402 = vmatprep.subr.mxu0 0.0
    %403 = vmatpush1.msra.mxu0 0.0
    %404 = vmatprep.subr.mxu0 0.0
    %405 = vmatpush1.msra.mxu0 0.0
    %406 = vmatprep.subr.mxu0 0.0
    %407 = vmatpush1.msra.mxu0 0.0
    %408 = vmatprep.subr.mxu0 0.0
    %409 = vmatpush1.msra.mxu0 0.0
    %410 = vmatprep.subr.mxu0 0.0
    %411 = vmatpush1.msra.mxu0 0.0
    %412 = vmatprep.subr.mxu0 0.0
    %413 = vmatpush1.msra.mxu0 0.0
    %414 = vmatprep.subr.mxu0 0.0
    %415 = vmatpush1.msra.mxu0 %v35
    %416 = vmatprep.subr.mxu0 0.0
    %417 = vmatpush1.msra.mxu0 %v34
    %418 = vmatprep.subr.mxu0 0.0
    %419 = vmatpush1.msra.mxu0 %v33
    %420 = vmatprep.subr.mxu0 0.0
    %421 = vmatpush1.msra.mxu0 %v32
    %422 = vmatprep.subr.mxu0 0.0
    %423 = vmatpush2.msra.mxu0 0.0
    %424 = vmatprep.subr.mxu0 0.0
    %425 = vmatpush2.msra.mxu0 0.0
    %426 = vmatprep.subr.mxu0 0.0
    %427 = vmatpush2.msra.mxu0 0.0
    %428 = vmatprep.subr.mxu0 0.0
    %429 = vmatpush2.msra.mxu0 0.0
    %430 = vmatprep.subr.mxu0 0.0
    %431 = vmatpush2.msra.mxu0 0.0
    %432 = vmatprep.subr.mxu0 0.0
    %433 = vmatpush2.msra.mxu0 0.0
    %434 = vmatprep.subr.mxu0 0.0
    %435 = vmatpush2.msra.mxu0 0.0
    %436 = vmatprep.subr.mxu0 0.0
    %437 = vmatpush2.msra.mxu0 0.0
    %438 = vmatprep.subr.mxu0 0.0
    %439 = vmatpush2.msra.mxu0 0.0
    %440 = vmatprep.subr.mxu0 0.0
    %441 = vmatpush2.msra.mxu0 0.0
    %442 = vmatprep.subr.mxu0 0.0
    %443 = vmatpush2.msra.mxu0 0.0
    %444 = vmatprep.subr.mxu0 0.0
    %445 = vmatpush2.msra.mxu0 0.0
    %446 = vmatprep.subr.mxu0 0.0
    %447 = vmatpush2.msra.mxu0 0.0
    %448 = vmatprep.subr.mxu0 0.0
    %449 = vmatpush2.msra.mxu0 0.0
    %450 = vmatprep.subr.mxu0 0.0
    %451 = vmatpush2.msra.mxu0 0.0
    %452 = vmatprep.subr.mxu0 0.0
    %453 = vmatpush2.msra.mxu0 0.0
    %454 = vmatprep.mubr.f32.mxu0 0.0
    %455 = vmatmul.mubr.f32.gmra.mxu0 %v388
    %v456 = vpop.f32.mrf.mxu0
    %v457 = vadd.f32 0.0, %v456
    %v458 = vpop.f32.mrf.mxu0
    %459 = vdwg.mxu0
    %v460 = vadd.f32 %v151, %v457
    %v461 = vxor.u32 %v460, 2147483648
    %v462 = vmul.f32 %v461, 1.442695
    %v463 = vpow.pop %v462
    %v464 = vadd.f32 %v463, 1.0
    %v465 = vrcp.pop %v464
    %v466 = vmul.f32 1.0, %v465
    %v467 = vtanh.pop %v460
    %v468 = vsel %vm183, %v467, %v466
    %v469 = vmul.f32 %v468, %v378
    %471 = vrot.lane.b32.xlu0 %v468, 64
    %v472 = vpop.permute.xlu0 %471
    %v474 = vmul.f32 %v468, %v472
    %476 = vrot.lane.b32.xlu0 %v474, 32
    %v477 = vpop.permute.xlu0 %476
    %v479 = vadd.f32 %v469, %v477
    %v480 = vtanh.pop %v479
    %482 = vrot.lane.b32.xlu0 %v480, 64
    %v483 = vpop.permute.xlu0 %482
    %v485 = vmul.f32 %v468, %v483
    %487 = vrot.lane.b32.xlu0 %v485, 32
    %v488 = vpop.permute.xlu0 %487
    %v489 = vsel %vm184, %v488, 0
    %491 = vmatprep.subr.mxu0 0.0
    %492 = vmatpush1.msra.mxu0 0.0
    %493 = vmatprep.subr.mxu0 0.0
    %494 = vmatpush1.msra.mxu0 0.0
    %495 = vmatprep.subr.mxu0 0.0
    %496 = vmatpush1.msra.mxu0 0.0
    %497 = vmatprep.subr.mxu0 0.0
    %498 = vmatpush1.msra.mxu0 0.0
    %499 = vmatprep.subr.mxu0 0.0
    %500 = vmatpush1.msra.mxu0 0.0
    %501 = vmatprep.subr.mxu0 0.0
    %502 = vmatpush1.msra.mxu0 0.0
    %503 = vmatprep.subr.mxu0 0.0
    %504 = vmatpush1.msra.mxu0 0.0
    %505 = vmatprep.subr.mxu0 0.0
    %506 = vmatpush1.msra.mxu0 0.0
    %507 = vmatprep.subr.mxu0 0.0
    %508 = vmatpush1.msra.mxu0 0.0
    %509 = vmatprep.subr.mxu0 0.0
    %510 = vmatpush1.msra.mxu0 0.0
    %511 = vmatprep.subr.mxu0 0.0
    %512 = vmatpush1.msra.mxu0 0.0
    %513 = vmatprep.subr.mxu0 0.0
    %514 = vmatpush1.msra.mxu0 0.0
    %515 = vmatprep.subr.mxu0 0.0
    %516 = vmatpush1.msra.mxu0 %v35
    %517 = vmatprep.subr.mxu0 0.0
    %518 = vmatpush1.msra.mxu0 %v34
    %519 = vmatprep.subr.mxu0 0.0
    %520 = vmatpush1.msra.mxu0 %v33
    %521 = vmatprep.subr.mxu0 0.0
    %522 = vmatpush1.msra.mxu0 %v32
    %523 = vmatprep.subr.mxu0 0.0
    %524 = vmatpush2.msra.mxu0 0.0
    %525 = vmatprep.subr.mxu0 0.0
    %526 = vmatpush2.msra.mxu0 0.0
    %527 = vmatprep.subr.mxu0 0.0
    %528 = vmatpush2.msra.mxu0 0.0
    %529 = vmatprep.subr.mxu0 0.0
    %530 = vmatpush2.msra.mxu0 0.0
    %531 = vmatprep.subr.mxu0 0.0
    %532 = vmatpush2.msra.mxu0 0.0
    %533 = vmatprep.subr.mxu0 0.0
    %534 = vmatpush2.msra.mxu0 0.0
    %535 = vmatprep.subr.mxu0 0.0
    %536 = vmatpush2.msra.mxu0 0.0
    %537 = vmatprep.subr.mxu0 0.0
    %538 = vmatpush2.msra.mxu0 0.0
    %539 = vmatprep.subr.mxu0 0.0
    %540 = vmatpush2.msra.mxu0 0.0
    %541 = vmatprep.subr.mxu0 0.0
    %542 = vmatpush2.msra.mxu0 0.0
    %543 = vmatprep.subr.mxu0 0.0
    %544 = vmatpush2.msra.mxu0 0.0
    %545 = vmatprep.subr.mxu0 0.0
    %546 = vmatpush2.msra.mxu0 0.0
    %547 = vmatprep.subr.mxu0 0.0
    %548 = vmatpush2.msra.mxu0 0.0
    %549 = vmatprep.subr.mxu0 0.0
    %550 = vmatpush2.msra.mxu0 0.0
    %551 = vmatprep.subr.mxu0 0.0
    %552 = vmatpush2.msra.mxu0 0.0
    %553 = vmatprep.subr.mxu0 0.0
    %554 = vmatpush2.msra.mxu0 0.0
    %555 = vmatprep.mubr.f32.mxu0 0.0
    %556 = vmatmul.mubr.f32.gmra.mxu0 %v489
    %v557 = vpop.f32.mrf.mxu0
    %v558 = vadd.f32 0.0, %v557
    %v559 = vpop.f32.mrf.mxu0
    %560 = vdwg.mxu0
    %v561 = vadd.f32 %v156, %v558
    %v562 = vxor.u32 %v561, 2147483648
    %v563 = vmul.f32 %v562, 1.442695
    %v564 = vpow.pop %v563
    %v565 = vadd.f32 %v564, 1.0
    %v566 = vrcp.pop %v565
    %v567 = vmul.f32 1.0, %v566
    %v568 = vtanh.pop %v561
    %v569 = vsel %vm183, %v568, %v567
    %v570 = vmul.f32 %v569, %v479
    %572 = vrot.lane.b32.xlu0 %v569, 64
    %v573 = vpop.permute.xlu0 %572
    %v575 = vmul.f32 %v569, %v573
    %577 = vrot.lane.b32.xlu0 %v575, 32
    %v578 = vpop.permute.xlu0 %577
    %v580 = vadd.f32 %v570, %v578
    %v581 = vtanh.pop %v580
    %583 = vrot.lane.b32.xlu0 %v581, 64
    %v584 = vpop.permute.xlu0 %583
    %v586 = vmul.f32 %v569, %v584
    %588 = vrot.lane.b32.xlu0 %v586, 32
    %v589 = vpop.permute.xlu0 %588
    %v590 = vsel %vm184, %v589, 0
    %592 = vmatprep.subr.mxu0 0.0
    %593 = vmatpush1.msra.mxu0 0.0
    %594 = vmatprep.subr.mxu0 0.0
    %595 = vmatpush1.msra.mxu0 0.0
    %596 = vmatprep.subr.mxu0 0.0
    %597 = vmatpush1.msra.mxu0 0.0
    %598 = vmatprep.subr.mxu0 0.0
    %599 = vmatpush1.msra.mxu0 0.0
    %600 = vmatprep.subr.mxu0 0.0
    %601 = vmatpush1.msra.mxu0 0.0
    %602 = vmatprep.subr.mxu0 0.0
    %603 = vmatpush1.msra.mxu0 0.0
    %604 = vmatprep.subr.mxu0 0.0
    %605 = vmatpush1.msra.mxu0 0.0
    %606 = vmatprep.subr.mxu0 0.0
    %607 = vmatpush1.msra.mxu0 0.0
    %608 = vmatprep.subr.mxu0 0.0
    %609 = vmatpush1.msra.mxu0 0.0
    %610 = vmatprep.subr.mxu0 0.0
    %611 = vmatpush1.msra.mxu0 0.0
    %612 = vmatprep.subr.mxu0 0.0
    %613 = vmatpush1.msra.mxu0 0.0
    %614 = vmatprep.subr.mxu0 0.0
    %615 = vmatpush1.msra.mxu0 0.0
    %616 = vmatprep.subr.mxu0 0.0
    %617 = vmatpush1.msra.mxu0 %v35
    %618 = vmatprep.subr.mxu0 0.0
    %619 = vmatpush1.msra.mxu0 %v34
    %620 = vmatprep.subr.mxu0 0.0
    %621 = vmatpush1.msra.mxu0 %v33
    %622 = vmatprep.subr.mxu0 0.0
    %623 = vmatpush1.msra.mxu0 %v32
    %624 = vmatprep.subr.mxu0 0.0
    %625 = vmatpush2.msra.mxu0 0.0
    %626 = vmatprep.subr.mxu0 0.0
    %627 = vmatpush2.msra.mxu0 0.0
    %628 = vmatprep.subr.mxu0 0.0
    %629 = vmatpush2.msra.mxu0 0.0
    %630 = vmatprep.subr.mxu0 0.0
    %631 = vmatpush2.msra.mxu0 0.0
    %632 = vmatprep.subr.mxu0 0.0
    %633 = vmatpush2.msra.mxu0 0.0
    %634 = vmatprep.subr.mxu0 0.0
    %635 = vmatpush2.msra.mxu0 0.0
    %636 = vmatprep.subr.mxu0 0.0
    %637 = vmatpush2.msra.mxu0 0.0
    %638 = vmatprep.subr.mxu0 0.0
    %639 = vmatpush2.msra.mxu0 0.0
    %640 = vmatprep.subr.mxu0 0.0
    %641 = vmatpush2.msra.mxu0 0.0
    %642 = vmatprep.subr.mxu0 0.0
    %643 = vmatpush2.msra.mxu0 0.0
    %644 = vmatprep.subr.mxu0 0.0
    %645 = vmatpush2.msra.mxu0 0.0
    %646 = vmatprep.subr.mxu0 0.0
    %647 = vmatpush2.msra.mxu0 0.0
    %648 = vmatprep.subr.mxu0 0.0
    %649 = vmatpush2.msra.mxu0 0.0
    %650 = vmatprep.subr.mxu0 0.0
    %651 = vmatpush2.msra.mxu0 0.0
    %652 = vmatprep.subr.mxu0 0.0
    %653 = vmatpush2.msra.mxu0 0.0
    %654 = vmatprep.subr.mxu0 0.0
    %655 = vmatpush2.msra.mxu0 0.0
    %656 = vmatprep.mubr.f32.mxu0 0.0
    %657 = vmatmul.mubr.f32.gmra.mxu0 %v590
    %v658 = vpop.f32.mrf.mxu0
    %v659 = vadd.f32 0.0, %v658
    %v660 = vpop.f32.mrf.mxu0
    %661 = vdwg.mxu0
    %v662 = vadd.f32 %v161, %v659
    %v663 = vxor.u32 %v662, 2147483648
    %v664 = vmul.f32 %v663, 1.442695
    %v665 = vpow.pop %v664
    %v666 = vadd.f32 %v665, 1.0
    %v667 = vrcp.pop %v666
    %v668 = vmul.f32 1.0, %v667
    %v669 = vtanh.pop %v662
    %v670 = vsel %vm183, %v669, %v668
    %v671 = vmul.f32 %v670, %v580
    %673 = vrot.lane.b32.xlu0 %v670, 64
    %v674 = vpop.permute.xlu0 %673
    %v676 = vmul.f32 %v670, %v674
    %678 = vrot.lane.b32.xlu0 %v676, 32
    %v679 = vpop.permute.xlu0 %678
    %v681 = vadd.f32 %v671, %v679
    %v682 = vtanh.pop %v681
    %684 = vrot.lane.b32.xlu0 %v682, 64
    %v685 = vpop.permute.xlu0 %684
    %v687 = vmul.f32 %v670, %v685
    %689 = vrot.lane.b32.xlu0 %v687, 32
    %v690 = vpop.permute.xlu0 %689
    %v691 = vsel %vm184, %v690, 0
    %693 = vmatprep.subr.mxu0 0.0
    %694 = vmatpush1.msra.mxu0 0.0
    %695 = vmatprep.subr.mxu0 0.0
    %696 = vmatpush1.msra.mxu0 0.0
    %697 = vmatprep.subr.mxu0 0.0
    %698 = vmatpush1.msra.mxu0 0.0
    %699 = vmatprep.subr.mxu0 0.0
    %700 = vmatpush1.msra.mxu0 0.0
    %701 = vmatprep.subr.mxu0 0.0
    %702 = vmatpush1.msra.mxu0 0.0
    %703 = vmatprep.subr.mxu0 0.0
    %704 = vmatpush1.msra.mxu0 0.0
    %705 = vmatprep.subr.mxu0 0.0
    %706 = vmatpush1.msra.mxu0 0.0
    %707 = vmatprep.subr.mxu0 0.0
    %708 = vmatpush1.msra.mxu0 0.0
    %709 = vmatprep.subr.mxu0 0.0
    %710 = vmatpush1.msra.mxu0 0.0
    %711 = vmatprep.subr.mxu0 0.0
    %712 = vmatpush1.msra.mxu0 0.0
    %713 = vmatprep.subr.mxu0 0.0
    %714 = vmatpush1.msra.mxu0 0.0
    %715 = vmatprep.subr.mxu0 0.0
    %716 = vmatpush1.msra.mxu0 0.0
    %717 = vmatprep.subr.mxu0 0.0
    %718 = vmatpush1.msra.mxu0 %v35
    %719 = vmatprep.subr.mxu0 0.0
    %720 = vmatpush1.msra.mxu0 %v34
    %721 = vmatprep.subr.mxu0 0.0
    %722 = vmatpush1.msra.mxu0 %v33
    %723 = vmatprep.subr.mxu0 0.0
    %724 = vmatpush1.msra.mxu0 %v32
    %725 = vmatprep.subr.mxu0 0.0
    %726 = vmatpush2.msra.mxu0 0.0
    %727 = vmatprep.subr.mxu0 0.0
    %728 = vmatpush2.msra.mxu0 0.0
    %729 = vmatprep.subr.mxu0 0.0
    %730 = vmatpush2.msra.mxu0 0.0
    %731 = vmatprep.subr.mxu0 0.0
    %732 = vmatpush2.msra.mxu0 0.0
    %733 = vmatprep.subr.mxu0 0.0
    %734 = vmatpush2.msra.mxu0 0.0
    %735 = vmatprep.subr.mxu0 0.0
    %736 = vmatpush2.msra.mxu0 0.0
    %737 = vmatprep.subr.mxu0 0.0
    %738 = vmatpush2.msra.mxu0 0.0
    %739 = vmatprep.subr.mxu0 0.0
    %740 = vmatpush2.msra.mxu0 0.0
    %741 = vmatprep.subr.mxu0 0.0
    %742 = vmatpush2.msra.mxu0 0.0
    %743 = vmatprep.subr.mxu0 0.0
    %744 = vmatpush2.msra.mxu0 0.0
    %745 = vmatprep.subr.mxu0 0.0
    %746 = vmatpush2.msra.mxu0 0.0
    %747 = vmatprep.subr.mxu0 0.0
    %748 = vmatpush2.msra.mxu0 0.0
    %749 = vmatprep.subr.mxu0 0.0
    %750 = vmatpush2.msra.mxu0 0.0
    %751 = vmatprep.subr.mxu0 0.0
    %752 = vmatpush2.msra.mxu0 0.0
    %753 = vmatprep.subr.mxu0 0.0
    %754 = vmatpush2.msra.mxu0 0.0
    %755 = vmatprep.subr.mxu0 0.0
    %756 = vmatpush2.msra.mxu0 0.0
    %757 = vmatprep.mubr.f32.mxu0 0.0
    %758 = vmatmul.mubr.f32.gmra.mxu0 %v691
    %v759 = vpop.f32.mrf.mxu0
    %v760 = vadd.f32 0.0, %v759
    %v761 = vpop.f32.mrf.mxu0
    %762 = vdwg.mxu0
    %v763 = vadd.f32 %v166, %v760
    %v764 = vxor.u32 %v763, 2147483648
    %v765 = vmul.f32 %v764, 1.442695
    %v766 = vpow.pop %v765
    %v767 = vadd.f32 %v766, 1.0
    %v768 = vrcp.pop %v767
    %v769 = vmul.f32 1.0, %v768
    %v770 = vtanh.pop %v763
    %v771 = vsel %vm183, %v770, %v769
    %v772 = vmul.f32 %v771, %v681
    %774 = vrot.lane.b32.xlu0 %v771, 64
    %v775 = vpop.permute.xlu0 %774
    %v777 = vmul.f32 %v771, %v775
    %779 = vrot.lane.b32.xlu0 %v777, 32
    %v780 = vpop.permute.xlu0 %779
    %v782 = vadd.f32 %v772, %v780
    %v783 = vtanh.pop %v782
    %785 = vrot.lane.b32.xlu0 %v783, 64
    %v786 = vpop.permute.xlu0 %785
    %v788 = vmul.f32 %v771, %v786
    %790 = vrot.lane.b32.xlu0 %v788, 32
    %v791 = vpop.permute.xlu0 %790
    %v792 = vsel %vm184, %v791, 0
    %794 = vmatprep.subr.mxu0 0.0
    %795 = vmatpush1.msra.mxu0 0.0
    %796 = vmatprep.subr.mxu0 0.0
    %797 = vmatpush1.msra.mxu0 0.0
    %798 = vmatprep.subr.mxu0 0.0
    %799 = vmatpush1.msra.mxu0 0.0
    %800 = vmatprep.subr.mxu0 0.0
    %801 = vmatpush1.msra.mxu0 0.0
    %802 = vmatprep.subr.mxu0 0.0
    %803 = vmatpush1.msra.mxu0 0.0
    %804 = vmatprep.subr.mxu0 0.0
    %805 = vmatpush1.msra.mxu0 0.0
    %806 = vmatprep.subr.mxu0 0.0
    %807 = vmatpush1.msra.mxu0 0.0
    %808 = vmatprep.subr.mxu0 0.0
    %809 = vmatpush1.msra.mxu0 0.0
    %810 = vmatprep.subr.mxu0 0.0
    %811 = vmatpush1.msra.mxu0 0.0
    %812 = vmatprep.subr.mxu0 0.0
    %813 = vmatpush1.msra.mxu0 0.0
    %814 = vmatprep.subr.mxu0 0.0
    %815 = vmatpush1.msra.mxu0 0.0
    %816 = vmatprep.subr.mxu0 0.0
    %817 = vmatpush1.msra.mxu0 0.0
    %818 = vmatprep.subr.mxu0 0.0
    %819 = vmatpush1.msra.mxu0 %v35
    %820 = vmatprep.subr.mxu0 0.0
    %821 = vmatpush1.msra.mxu0 %v34
    %822 = vmatprep.subr.mxu0 0.0
    %823 = vmatpush1.msra.mxu0 %v33
    %824 = vmatprep.subr.mxu0 0.0
    %825 = vmatpush1.msra.mxu0 %v32
    %826 = vmatprep.subr.mxu0 0.0
    %827 = vmatpush2.msra.mxu0 0.0
    %828 = vmatprep.subr.mxu0 0.0
    %829 = vmatpush2.msra.mxu0 0.0
    %830 = vmatprep.subr.mxu0 0.0
    %831 = vmatpush2.msra.mxu0 0.0
    %832 = vmatprep.subr.mxu0 0.0
    %833 = vmatpush2.msra.mxu0 0.0
    %834 = vmatprep.subr.mxu0 0.0
    %835 = vmatpush2.msra.mxu0 0.0
    %836 = vmatprep.subr.mxu0 0.0
    %837 = vmatpush2.msra.mxu0 0.0
    %838 = vmatprep.subr.mxu0 0.0
    %839 = vmatpush2.msra.mxu0 0.0
    %840 = vmatprep.subr.mxu0 0.0
    %841 = vmatpush2.msra.mxu0 0.0
    %842 = vmatprep.subr.mxu0 0.0
    %843 = vmatpush2.msra.mxu0 0.0
    %844 = vmatprep.subr.mxu0 0.0
    %845 = vmatpush2.msra.mxu0 0.0
    %846 = vmatprep.subr.mxu0 0.0
    %847 = vmatpush2.msra.mxu0 0.0
    %848 = vmatprep.subr.mxu0 0.0
    %849 = vmatpush2.msra.mxu0 0.0
    %850 = vmatprep.subr.mxu0 0.0
    %851 = vmatpush2.msra.mxu0 0.0
    %852 = vmatprep.subr.mxu0 0.0
    %853 = vmatpush2.msra.mxu0 0.0
    %854 = vmatprep.subr.mxu0 0.0
    %855 = vmatpush2.msra.mxu0 0.0
    %856 = vmatprep.subr.mxu0 0.0
    %857 = vmatpush2.msra.mxu0 0.0
    %858 = vmatprep.mubr.f32.mxu0 0.0
    %859 = vmatmul.mubr.f32.gmra.mxu0 %v792
    %v860 = vpop.f32.mrf.mxu0
    %v861 = vadd.f32 0.0, %v860
    %v862 = vpop.f32.mrf.mxu0
    %863 = vdwg.mxu0
    %v864 = vadd.f32 %v171, %v861
    %v865 = vxor.u32 %v864, 2147483648
    %v866 = vmul.f32 %v865, 1.442695
    %v867 = vpow.pop %v866
    %v868 = vadd.f32 %v867, 1.0
    %v869 = vrcp.pop %v868
    %v870 = vmul.f32 1.0, %v869
    %v871 = vtanh.pop %v864
    %v872 = vsel %vm183, %v871, %v870
    %v873 = vmul.f32 %v872, %v782
    %875 = vrot.lane.b32.xlu0 %v872, 64
    %v876 = vpop.permute.xlu0 %875
    %v878 = vmul.f32 %v872, %v876
    %880 = vrot.lane.b32.xlu0 %v878, 32
    %v881 = vpop.permute.xlu0 %880
    %v883 = vadd.f32 %v873, %v881
    %v884 = vtanh.pop %v883
    %886 = vrot.lane.b32.xlu0 %v884, 64
    %v887 = vpop.permute.xlu0 %886
    %v889 = vmul.f32 %v872, %v887
    %891 = vrot.lane.b32.xlu0 %v889, 32
    %v892 = vpop.permute.xlu0 %891
    %v893 = vsel %vm184, %v892, 0
    %895 = vmatprep.subr.mxu0 0.0
    %896 = vmatpush1.msra.mxu0 0.0
    %897 = vmatprep.subr.mxu0 0.0
    %898 = vmatpush1.msra.mxu0 0.0
    %899 = vmatprep.subr.mxu0 0.0
    %900 = vmatpush1.msra.mxu0 0.0
    %901 = vmatprep.subr.mxu0 0.0
    %902 = vmatpush1.msra.mxu0 0.0
    %903 = vmatprep.subr.mxu0 0.0
    %904 = vmatpush1.msra.mxu0 0.0
    %905 = vmatprep.subr.mxu0 0.0
    %906 = vmatpush1.msra.mxu0 0.0
    %907 = vmatprep.subr.mxu0 0.0
    %908 = vmatpush1.msra.mxu0 0.0
    %909 = vmatprep.subr.mxu0 0.0
    %910 = vmatpush1.msra.mxu0 0.0
    %911 = vmatprep.subr.mxu0 0.0
    %912 = vmatpush1.msra.mxu0 0.0
    %913 = vmatprep.subr.mxu0 0.0
    %914 = vmatpush1.msra.mxu0 0.0
    %915 = vmatprep.subr.mxu0 0.0
    %916 = vmatpush1.msra.mxu0 0.0
    %917 = vmatprep.subr.mxu0 0.0
    %918 = vmatpush1.msra.mxu0 0.0
    %919 = vmatprep.subr.mxu0 0.0
    %920 = vmatpush1.msra.mxu0 %v35
    %921 = vmatprep.subr.mxu0 0.0
    %922 = vmatpush1.msra.mxu0 %v34
    %923 = vmatprep.subr.mxu0 0.0
    %924 = vmatpush1.msra.mxu0 %v33
    %925 = vmatprep.subr.mxu0 0.0
    %926 = vmatpush1.msra.mxu0 %v32
    %927 = vmatprep.subr.mxu0 0.0
    %928 = vmatpush2.msra.mxu0 0.0
    %929 = vmatprep.subr.mxu0 0.0
    %930 = vmatpush2.msra.mxu0 0.0
    %931 = vmatprep.subr.mxu0 0.0
    %932 = vmatpush2.msra.mxu0 0.0
    %933 = vmatprep.subr.mxu0 0.0
    %934 = vmatpush2.msra.mxu0 0.0
    %935 = vmatprep.subr.mxu0 0.0
    %936 = vmatpush2.msra.mxu0 0.0
    %937 = vmatprep.subr.mxu0 0.0
    %938 = vmatpush2.msra.mxu0 0.0
    %939 = vmatprep.subr.mxu0 0.0
    %940 = vmatpush2.msra.mxu0 0.0
    %941 = vmatprep.subr.mxu0 0.0
    %942 = vmatpush2.msra.mxu0 0.0
    %943 = vmatprep.subr.mxu0 0.0
    %944 = vmatpush2.msra.mxu0 0.0
    %945 = vmatprep.subr.mxu0 0.0
    %946 = vmatpush2.msra.mxu0 0.0
    %947 = vmatprep.subr.mxu0 0.0
    %948 = vmatpush2.msra.mxu0 0.0
    %949 = vmatprep.subr.mxu0 0.0
    %950 = vmatpush2.msra.mxu0 0.0
    %951 = vmatprep.subr.mxu0 0.0
    %952 = vmatpush2.msra.mxu0 0.0
    %953 = vmatprep.subr.mxu0 0.0
    %954 = vmatpush2.msra.mxu0 0.0
    %955 = vmatprep.subr.mxu0 0.0
    %956 = vmatpush2.msra.mxu0 0.0
    %957 = vmatprep.subr.mxu0 0.0
    %958 = vmatpush2.msra.mxu0 0.0
    %959 = vmatprep.mubr.f32.mxu0 0.0
    %960 = vmatmul.mubr.f32.gmra.mxu0 %v893
    %v961 = vpop.f32.mrf.mxu0
    %v962 = vadd.f32 0.0, %v961
    %v963 = vpop.f32.mrf.mxu0
    %964 = vdwg.mxu0
    %v965 = vadd.f32 %v176, %v962
    %v966 = vxor.u32 %v965, 2147483648
    %v967 = vmul.f32 %v966, 1.442695
    %v968 = vpow.pop %v967
    %v969 = vadd.f32 %v968, 1.0
    %v970 = vrcp.pop %v969
    %v971 = vmul.f32 1.0, %v970
    %v972 = vtanh.pop %v965
    %v973 = vsel %vm183, %v972, %v971
    %v974 = vmul.f32 %v973, %v883
    %976 = vrot.lane.b32.xlu0 %v973, 64
    %v977 = vpop.permute.xlu0 %976
    %v979 = vmul.f32 %v973, %v977
    %981 = vrot.lane.b32.xlu0 %v979, 32
    %v982 = vpop.permute.xlu0 %981
    %v984 = vadd.f32 %v974, %v982
    %v985 = vtanh.pop %v984
    %987 = vrot.lane.b32.xlu0 %v985, 64
    %v988 = vpop.permute.xlu0 %987
    %v990 = vmul.f32 %v973, %v988
    %v991 = vld [vmem:[%s0 + $0x40] sm:$0xff]
    %v992 = vld [vmem:[%s2] sm:$0xf]
    %v993 = vld [vmem:[%s2 + $0x4] sm:$0xf]
    %v994 = vld [vmem:[%s2 + $0x8] sm:$0xf]
    %v995 = vld [vmem:[%s2 + $0xc] sm:$0xf]
    %v996 = vld [vmem:[%s2 + $0x10] sm:$0xf]
    %v997 = vld [vmem:[%s2 + $0x18] sm:$0xf]
    %v998 = vld [vmem:[%s2 + $0x1c] sm:$0xf]
    %v999 = vld [vmem:[%s2 + $0x20] sm:$0xf]
    %v1000 = vld [vmem:[%s2 + $0x24] sm:$0xf]
    %v1001 = vld [vmem:[%s2 + $0x28] sm:$0xf]
    %v1002 = vld [vmem:[%s2 + $0x2c] sm:$0xf]
    %v1003 = vld [vmem:[%s2 + $0x30] sm:$0xf]
    %v1004 = vld [vmem:[%s2 + $0x34] sm:$0xf]
    %v1005 = vld [vmem:[%s2 + $0x38] sm:$0xf]
    %v1006 = vld [vmem:[%s2 + $0x3c] sm:$0xf]
    %v1007 = vld [vmem:[%s2 + $0x40] sm:$0xf]
    %v1008 = vld [vmem:[%s2 + $0x44] sm:$0xf]
    %v1009 = vld [vmem:[%s2 + $0x48] sm:$0xf]
    %v1010 = vld [vmem:[%s2 + $0x4c] sm:$0xf]
    %v1011 = vld [vmem:[%s2 + $0x50] sm:$0xf]
    %v1012 = vld [vmem:[%s2 + $0x54] sm:$0xf]
    %v1013 = vld [vmem:[%s2 + $0x58] sm:$0xf]
    %v1014 = vld [vmem:[%s2 + $0x5c] sm:$0xf]
    %v1015 = vld [vmem:[%s2 + $0x60] sm:$0xf]
    %v1016 = vld [vmem:[%s2 + $0x64] sm:$0xf]
    %v1017 = vld [vmem:[%s2 + $0x68] sm:$0xf]
    %v1018 = vld [vmem:[%s2 + $0x6c] sm:$0xf]
    %v1019 = vld [vmem:[%s2 + $0x70] sm:$0xf]
    %v1020 = vld [vmem:[%s2 + $0x74] sm:$0xf]
    %v1021 = vld [vmem:[%s2 + $0x78] sm:$0xf]
    %v1022 = vld [vmem:[%s2 + $0x7c] sm:$0xf]
    %v1023 = vld [vmem:[%s2 + $0x80] sm:$0xf]
    %v1024 = vld [vmem:[%s2 + $0x84] sm:$0xf]
    %v1025 = vld [vmem:[%s2 + $0x88] sm:$0xf]
    %v1026 = vld [vmem:[%s2 + $0x8c] sm:$0xf]
    %v1027 = vld [vmem:[%s2 + $0x90] sm:$0xf]
    %v1028 = vld [vmem:[%s2 + $0x94] sm:$0xf]
    %v1029 = vld [vmem:[%s2 + $0x98] sm:$0xf]
    %v1030 = vld [vmem:[%s2 + $0x9c] sm:$0xf]
    %v1031 = vld [vmem:[%s2 + $0xa0] sm:$0xf]
    %v1032 = vld [vmem:[%s2 + $0xa4] sm:$0xf]
    %v1033 = vld [vmem:[%s2 + $0xa8] sm:$0xf]
    %v1034 = vld [vmem:[%s2 + $0xac] sm:$0xf]
    %v1035 = vld [vmem:[%s2 + $0xb0] sm:$0xf]
    %v1036 = vld [vmem:[%s2 + $0xb4] sm:$0xf]
    %v1037 = vld [vmem:[%s2 + $0xb8] sm:$0xf]
    %v1038 = vld [vmem:[%s2 + $0xbc] sm:$0xf]
    %v1039 = vld [vmem:[%s2 + $0xc0] sm:$0xf]
    %v1040 = vld [vmem:[%s2 + $0xc4] sm:$0xf]
    %v1041 = vld [vmem:[%s2 + $0xc8] sm:$0xf]
    %v1042 = vld [vmem:[%s2 + $0xcc] sm:$0xf]
    %v1043 = vld [vmem:[%s2 + $0xd0] sm:$0xf]
    %v1044 = vld [vmem:[%s2 + $0xd4] sm:$0xf]
    %v1045 = vpack.c.bf16 %v990, %v990
    %v1046 = vpack.c.bf16 %v991, %v991
    %v1048 = vsel %vm49, %v1046, 0
    %vm1050 = vcmask 1043456
    %v1052 = vsel %vm1050, %v996, 0
    %1054 = vmatprep.subr.bf16.mxu0 0
    %1055 = vmatpush1.bf16.msra.mxu0 0
    %1056 = vmatprep.subr.bf16.mxu0 0
    %1057 = vmatpush1.bf16.msra.mxu0 0
    %1058 = vmatprep.subr.bf16.mxu0 0
    %1059 = vmatpush1.bf16.msra.mxu0 0
    %1060 = vmatprep.subr.bf16.mxu0 0
    %1061 = vmatpush1.bf16.msra.mxu0 0
    %1062 = vmatprep.subr.bf16.mxu0 0
    %1063 = vmatpush1.bf16.msra.mxu0 0
    %1064 = vmatprep.subr.bf16.mxu0 0
    %1065 = vmatpush1.bf16.msra.mxu0 0
    %1066 = vmatprep.subr.bf16.mxu0 0
    %1067 = vmatpush1.bf16.msra.mxu0 0
    %1068 = vmatprep.subr.bf16.mxu0 0
    %1069 = vmatpush1.bf16.msra.mxu0 %v1052
    %1070 = vmatprep.subr.bf16.mxu0 0
    %1071 = vmatpush2.bf16.msra.mxu0 0
    %1072 = vmatprep.subr.bf16.mxu0 0
    %1073 = vmatpush2.bf16.msra.mxu0 0
    %1074 = vmatprep.subr.bf16.mxu0 0
    %1075 = vmatpush2.bf16.msra.mxu0 0
    %1076 = vmatprep.subr.bf16.mxu0 0
    %1077 = vmatpush2.bf16.msra.mxu0 0
    %1078 = vmatprep.subr.bf16.mxu0 0
    %1079 = vmatpush2.bf16.msra.mxu0 0
    %1080 = vmatprep.subr.bf16.mxu0 0
    %1081 = vmatpush2.bf16.msra.mxu0 0
    %1082 = vmatprep.subr.bf16.mxu0 0
    %1083 = vmatpush2.bf16.msra.mxu0 0
    %1084 = vmatprep.subr.bf16.mxu0 0
    %1085 = vmatpush2.bf16.msra.mxu0 0
    %1086 = vmatprep.mubr.bf16.mxu0 0
    %1087 = vmatmul.mubr.bf16.gmra.mxu0 %v1048
    %v1088 = vpop.f32.mrf.mxu0
    %v1089 = vadd.f32 0.0, %v1088
    %v1090 = vpop.f32.mrf.mxu0
    %v1091 = vpop.f32.mrf.mxu0
    %v1092 = vpop.f32.mrf.mxu0
    %1093 = vdwg.mxu0
    %1095 = vrot.lane.b32.xlu0 %v1045, 32
    %v1096 = vpop.permute.xlu0 %1095
    %v1101 = vunpack.c.l.b16 %v992
    %v1102 = vunpack.c.l.b16 %v993
    %v1103 = vunpack.c.l.b16 %v994
    %v1104 = vunpack.c.l.b16 %v995
    %v1105 = vpack.c.b16 %v1102, %v1101
    %v1106 = vpack.c.b16 %v1104, %v1103
    %v1110 = vsel %vm184, %v1096, 0
    %1112 = vmatprep.subr.bf16.mxu0 0
    %1113 = vmatpush1.bf16.msra.mxu0 0
    %1114 = vmatprep.subr.bf16.mxu0 0
    %1115 = vmatpush1.bf16.msra.mxu0 0
    %1116 = vmatprep.subr.bf16.mxu0 0
    %1117 = vmatpush1.bf16.msra.mxu0 0
    %1118 = vmatprep.subr.bf16.mxu0 0
    %1119 = vmatpush1.bf16.msra.mxu0 0
    %1120 = vmatprep.subr.bf16.mxu0 0
    %1121 = vmatpush1.bf16.msra.mxu0 0
    %1122 = vmatprep.subr.bf16.mxu0 0
    %1123 = vmatpush1.bf16.msra.mxu0 0
    %1124 = vmatprep.subr.bf16.mxu0 0
    %1125 = vmatpush1.bf16.msra.mxu0 %v1106
    %1126 = vmatprep.subr.bf16.mxu0 0
    %1127 = vmatpush1.bf16.msra.mxu0 %v1105
    %1128 = vmatprep.subr.bf16.mxu0 0
    %1129 = vmatpush2.bf16.msra.mxu0 0
    %1130 = vmatprep.subr.bf16.mxu0 0
    %1131 = vmatpush2.bf16.msra.mxu0 0
    %1132 = vmatprep.subr.bf16.mxu0 0
    %1133 = vmatpush2.bf16.msra.mxu0 0
    %1134 = vmatprep.subr.bf16.mxu0 0
    %1135 = vmatpush2.bf16.msra.mxu0 0
    %1136 = vmatprep.subr.bf16.mxu0 0
    %1137 = vmatpush2.bf16.msra.mxu0 0
    %1138 = vmatprep.subr.bf16.mxu0 0
    %1139 = vmatpush2.bf16.msra.mxu0 0
    %1140 = vmatprep.subr.bf16.mxu0 0
    %1141 = vmatpush2.bf16.msra.mxu0 0
    %1142 = vmatprep.subr.bf16.mxu0 0
    %1143 = vmatpush2.bf16.msra.mxu0 0
    %1144 = vmatprep.mubr.bf16.mxu0 0
    %1145 = vmatmul.mubr.bf16.gmra.mxu0 %v1110
    %v1146 = vpop.f32.mrf.mxu0
    %v1147 = vadd.f32 %v1089, %v1146
    %v1148 = vpop.f32.mrf.mxu0
    %v1149 = vpop.f32.mrf.mxu0
    %v1150 = vpop.f32.mrf.mxu0
    %1151 = vdwg.mxu0
    %v1152 = vlaneseq
    %v1153 = vshrl.u32 %v1152, 7
    %v1154 = vsub.s32 1, %v1153
    %v1155 = vrot.slane %v36, %v1154
    %v1156 = vadd.f32 %v1147, %v1155
    %v1157 = vmax.f32 %v1156, 0.0
    %v1158 = vpack.c.bf16 %v1157, %v1157
    %v1159 = vlaneseq
    %v1160 = vshrl.u32 %v1159, 7
    %v1161 = vsub.s32 2, %v1160
    %v1162 = vrot.slane %v36, %v1161
    %v1179 = vunpack.c.l.b16 %v997
    %v1180 = vunpack.c.l.b16 %v998
    %v1181 = vunpack.c.l.b16 %v999
    %v1182 = vunpack.c.l.b16 %v1000
    %v1183 = vunpack.c.l.b16 %v1001
    %v1184 = vunpack.c.l.b16 %v1002
    %v1185 = vunpack.c.l.b16 %v1003
    %v1186 = vunpack.c.l.b16 %v1004
    %v1187 = vunpack.c.l.b16 %v1005
    %v1188 = vunpack.c.l.b16 %v1006
    %v1189 = vunpack.c.l.b16 %v1007
    %v1190 = vunpack.c.l.b16 %v1008
    %v1191 = vunpack.c.l.b16 %v1009
    %v1192 = vunpack.c.l.b16 %v1010
    %v1193 = vunpack.c.l.b16 %v1011
    %v1194 = vunpack.c.l.b16 %v1012
    %v1195 = vpack.c.b16 %v1180, %v1179
    %v1196 = vpack.c.b16 %v1182, %v1181
    %v1197 = vpack.c.b16 %v1184, %v1183
    %v1198 = vpack.c.b16 %v1186, %v1185
    %v1199 = vpack.c.b16 %v1188, %v1187
    %v1200 = vpack.c.b16 %v1190, %v1189
    %v1201 = vpack.c.b16 %v1192, %v1191
    %v1202 = vpack.c.b16 %v1194, %v1193
    %1211 = vmatprep.subr.bf16.mxu0 0
    %1212 = vmatpush1.bf16.msra.mxu0 %v1202
    %1213 = vmatprep.subr.bf16.mxu0 0
    %1214 = vmatpush1.bf16.msra.mxu0 %v1201
    %1215 = vmatprep.subr.bf16.mxu0 0
    %1216 = vmatpush1.bf16.msra.mxu0 %v1200
    %1217 = vmatprep.subr.bf16.mxu0 0
    %1218 = vmatpush1.bf16.msra.mxu0 %v1199
    %1219 = vmatprep.subr.bf16.mxu0 0
    %1220 = vmatpush1.bf16.msra.mxu0 %v1198
    %1221 = vmatprep.subr.bf16.mxu0 0
    %1222 = vmatpush1.bf16.msra.mxu0 %v1197
    %1223 = vmatprep.subr.bf16.mxu0 0
    %1224 = vmatpush1.bf16.msra.mxu0 %v1196
    %1225 = vmatprep.subr.bf16.mxu0 0
    %1226 = vmatpush1.bf16.msra.mxu0 %v1195
    %1227 = vmatprep.subr.bf16.mxu0 0
    %1228 = vmatpush2.bf16.msra.mxu0 0
    %1229 = vmatprep.subr.bf16.mxu0 0
    %1230 = vmatpush2.bf16.msra.mxu0 0
    %1231 = vmatprep.subr.bf16.mxu0 0
    %1232 = vmatpush2.bf16.msra.mxu0 0
    %1233 = vmatprep.subr.bf16.mxu0 0
    %1234 = vmatpush2.bf16.msra.mxu0 0
    %1235 = vmatprep.subr.bf16.mxu0 0
    %1236 = vmatpush2.bf16.msra.mxu0 0
    %1237 = vmatprep.subr.bf16.mxu0 0
    %1238 = vmatpush2.bf16.msra.mxu0 0
    %1239 = vmatprep.subr.bf16.mxu0 0
    %1240 = vmatpush2.bf16.msra.mxu0 0
    %1241 = vmatprep.subr.bf16.mxu0 0
    %1242 = vmatpush2.bf16.msra.mxu0 0
    %1243 = vmatprep.mubr.bf16.mxu0 0
    %1244 = vmatmul.mubr.bf16.gmra.mxu0 %v1158
    %v1245 = vpop.f32.mrf.mxu0
    %v1246 = vadd.f32 %v1162, %v1245
    %v1247 = vpop.f32.mrf.mxu0
    %v1248 = vpop.f32.mrf.mxu0
    %v1249 = vpop.f32.mrf.mxu0
    %1250 = vdwg.mxu0
    %v1251 = vmax.f32 %v1246, 0.0
    %v1252 = vpack.c.bf16 %v1251, %v1251
    %v1253 = vlaneseq
    %v1254 = vshrl.u32 %v1253, 7
    %v1255 = vsub.s32 3, %v1254
    %v1256 = vrot.slane %v36, %v1255
    %v1273 = vunpack.c.l.b16 %v1013
    %v1274 = vunpack.c.l.b16 %v1014
    %v1275 = vunpack.c.l.b16 %v1015
    %v1276 = vunpack.c.l.b16 %v1016
    %v1277 = vunpack.c.l.b16 %v1017
    %v1278 = vunpack.c.l.b16 %v1018
    %v1279 = vunpack.c.l.b16 %v1019
    %v1280 = vunpack.c.l.b16 %v1020
    %v1281 = vunpack.c.l.b16 %v1021
    %v1282 = vunpack.c.l.b16 %v1022
    %v1283 = vunpack.c.l.b16 %v1023
    %v1284 = vunpack.c.l.b16 %v1024
    %v1285 = vunpack.c.l.b16 %v1025
    %v1286 = vunpack.c.l.b16 %v1026
    %v1287 = vunpack.c.l.b16 %v1027
    %v1288 = vunpack.c.l.b16 %v1028
    %v1289 = vpack.c.b16 %v1274, %v1273
    %v1290 = vpack.c.b16 %v1276, %v1275
    %v1291 = vpack.c.b16 %v1278, %v1277
    %v1292 = vpack.c.b16 %v1280, %v1279
    %v1293 = vpack.c.b16 %v1282, %v1281
    %v1294 = vpack.c.b16 %v1284, %v1283
    %v1295 = vpack.c.b16 %v1286, %v1285
    %v1296 = vpack.c.b16 %v1288, %v1287
    %1305 = vmatprep.subr.bf16.mxu0 0
    %1306 = vmatpush1.bf16.msra.mxu0 %v1296
    %1307 = vmatprep.subr.bf16.mxu0 0
    %1308 = vmatpush1.bf16.msra.mxu0 %v1295
    %1309 = vmatprep.subr.bf16.mxu0 0
    %1310 = vmatpush1.bf16.msra.mxu0 %v1294
    %1311 = vmatprep.subr.bf16.mxu0 0
    %1312 = vmatpush1.bf16.msra.mxu0 %v1293
    %1313 = vmatprep.subr.bf16.mxu0 0
    %1314 = vmatpush1.bf16.msra.mxu0 %v1292
    %1315 = vmatprep.subr.bf16.mxu0 0
    %1316 = vmatpush1.bf16.msra.mxu0 %v1291
    %1317 = vmatprep.subr.bf16.mxu0 0
    %1318 = vmatpush1.bf16.msra.mxu0 %v1290
    %1319 = vmatprep.subr.bf16.mxu0 0
    %1320 = vmatpush1.bf16.msra.mxu0 %v1289
    %1321 = vmatprep.subr.bf16.mxu0 0
    %1322 = vmatpush2.bf16.msra.mxu0 0
    %1323 = vmatprep.subr.bf16.mxu0 0
    %1324 = vmatpush2.bf16.msra.mxu0 0
    %1325 = vmatprep.subr.bf16.mxu0 0
    %1326 = vmatpush2.bf16.msra.mxu0 0
    %1327 = vmatprep.subr.bf16.mxu0 0
    %1328 = vmatpush2.bf16.msra.mxu0 0
    %1329 = vmatprep.subr.bf16.mxu0 0
    %1330 = vmatpush2.bf16.msra.mxu0 0
    %1331 = vmatprep.subr.bf16.mxu0 0
    %1332 = vmatpush2.bf16.msra.mxu0 0
    %1333 = vmatprep.subr.bf16.mxu0 0
    %1334 = vmatpush2.bf16.msra.mxu0 0
    %1335 = vmatprep.subr.bf16.mxu0 0
    %1336 = vmatpush2.bf16.msra.mxu0 0
    %1337 = vmatprep.mubr.bf16.mxu0 0
    %1338 = vmatmul.mubr.bf16.gmra.mxu0 %v1252
    %v1339 = vpop.f32.mrf.mxu0
    %v1340 = vadd.f32 %v1256, %v1339
    %v1341 = vpop.f32.mrf.mxu0
    %v1342 = vpop.f32.mrf.mxu0
    %v1343 = vpop.f32.mrf.mxu0
    %1344 = vdwg.mxu0
    %v1345 = vmax.f32 %v1340, 0.0
    %v1346 = vpack.c.bf16 %v1345, %v1345
    %v1347 = vlaneseq
    %v1348 = vshrl.u32 %v1347, 7
    %v1349 = vsub.s32 4, %v1348
    %v1350 = vrot.slane %v36, %v1349
    %v1367 = vunpack.c.l.b16 %v1029
    %v1368 = vunpack.c.l.b16 %v1030
    %v1369 = vunpack.c.l.b16 %v1031
    %v1370 = vunpack.c.l.b16 %v1032
    %v1371 = vunpack.c.l.b16 %v1033
    %v1372 = vunpack.c.l.b16 %v1034
    %v1373 = vunpack.c.l.b16 %v1035
    %v1374 = vunpack.c.l.b16 %v1036
    %v1375 = vunpack.c.l.b16 %v1037
    %v1376 = vunpack.c.l.b16 %v1038
    %v1377 = vunpack.c.l.b16 %v1039
    %v1378 = vunpack.c.l.b16 %v1040
    %v1379 = vunpack.c.l.b16 %v1041
    %v1380 = vunpack.c.l.b16 %v1042
    %v1381 = vunpack.c.l.b16 %v1043
    %v1382 = vunpack.c.l.b16 %v1044
    %v1383 = vpack.c.b16 %v1368, %v1367
    %v1384 = vpack.c.b16 %v1370, %v1369
    %v1385 = vpack.c.b16 %v1372, %v1371
    %v1386 = vpack.c.b16 %v1374, %v1373
    %v1387 = vpack.c.b16 %v1376, %v1375
    %v1388 = vpack.c.b16 %v1378, %v1377
    %v1389 = vpack.c.b16 %v1380, %v1379
    %v1390 = vpack.c.b16 %v1382, %v1381
    %1399 = vmatprep.subr.bf16.mxu0 0
    %1400 = vmatpush1.bf16.msra.mxu0 %v1390
    %1401 = vmatprep.subr.bf16.mxu0 0
    %1402 = vmatpush1.bf16.msra.mxu0 %v1389
    %1403 = vmatprep.subr.bf16.mxu0 0
    %1404 = vmatpush1.bf16.msra.mxu0 %v1388
    %1405 = vmatprep.subr.bf16.mxu0 0
    %1406 = vmatpush1.bf16.msra.mxu0 %v1387
    %1407 = vmatprep.subr.bf16.mxu0 0
    %1408 = vmatpush1.bf16.msra.mxu0 %v1386
    %1409 = vmatprep.subr.bf16.mxu0 0
    %1410 = vmatpush1.bf16.msra.mxu0 %v1385
    %1411 = vmatprep.subr.bf16.mxu0 0
    %1412 = vmatpush1.bf16.msra.mxu0 %v1384
    %1413 = vmatprep.subr.bf16.mxu0 0
    %1414 = vmatpush1.bf16.msra.mxu0 %v1383
    %1415 = vmatprep.subr.bf16.mxu0 0
    %1416 = vmatpush2.bf16.msra.mxu0 0
    %1417 = vmatprep.subr.bf16.mxu0 0
    %1418 = vmatpush2.bf16.msra.mxu0 0
    %1419 = vmatprep.subr.bf16.mxu0 0
    %1420 = vmatpush2.bf16.msra.mxu0 0
    %1421 = vmatprep.subr.bf16.mxu0 0
    %1422 = vmatpush2.bf16.msra.mxu0 0
    %1423 = vmatprep.subr.bf16.mxu0 0
    %1424 = vmatpush2.bf16.msra.mxu0 0
    %1425 = vmatprep.subr.bf16.mxu0 0
    %1426 = vmatpush2.bf16.msra.mxu0 0
    %1427 = vmatprep.subr.bf16.mxu0 0
    %1428 = vmatpush2.bf16.msra.mxu0 0
    %1429 = vmatprep.subr.bf16.mxu0 0
    %1430 = vmatpush2.bf16.msra.mxu0 0
    %1431 = vmatprep.mubr.bf16.mxu0 0
    %1432 = vmatmul.mubr.bf16.gmra.mxu0 %v1346
    %v1433 = vpop.f32.mrf.mxu0
    %v1434 = vadd.f32 %v1350, %v1433
    %v1435 = vpop.f32.mrf.mxu0
    %v1436 = vpop.f32.mrf.mxu0
    %v1437 = vpop.f32.mrf.mxu0
    %1438 = vdwg.mxu0
    %v1439 = vlaneseq
    %v1440 = vshrl.u32 %v1439, 7
    %v1441 = vsub.s32 5, %v1440
    %v1442 = vrot.slane %v36, %v1441
    %1443 = vmatprep.subr.bf16.mxu0 0
    %1444 = vmatpush1.bf16.msra.mxu0 %v1390
    %1445 = vmatprep.subr.bf16.mxu0 0
    %1446 = vmatpush1.bf16.msra.mxu0 %v1389
    %1447 = vmatprep.subr.bf16.mxu0 0
    %1448 = vmatpush1.bf16.msra.mxu0 %v1388
    %1449 = vmatprep.subr.bf16.mxu0 0
    %1450 = vmatpush1.bf16.msra.mxu0 %v1387
    %1451 = vmatprep.subr.bf16.mxu0 0
    %1452 = vmatpush1.bf16.msra.mxu0 %v1386
    %1453 = vmatprep.subr.bf16.mxu0 0
    %1454 = vmatpush1.bf16.msra.mxu0 %v1385
    %1455 = vmatprep.subr.bf16.mxu0 0
    %1456 = vmatpush1.bf16.msra.mxu0 %v1384
    %1457 = vmatprep.subr.bf16.mxu0 0
    %1458 = vmatpush1.bf16.msra.mxu0 %v1383
    %1459 = vmatprep.subr.bf16.mxu0 0
    %1460 = vmatpush2.bf16.msra.mxu0 0
    %1461 = vmatprep.subr.bf16.mxu0 0
    %1462 = vmatpush2.bf16.msra.mxu0 0
    %1463 = vmatprep.subr.bf16.mxu0 0
    %1464 = vmatpush2.bf16.msra.mxu0 0
    %1465 = vmatprep.subr.bf16.mxu0 0
    %1466 = vmatpush2.bf16.msra.mxu0 0
    %1467 = vmatprep.subr.bf16.mxu0 0
    %1468 = vmatpush2.bf16.msra.mxu0 0
    %1469 = vmatprep.subr.bf16.mxu0 0
    %1470 = vmatpush2.bf16.msra.mxu0 0
    %1471 = vmatprep.subr.bf16.mxu0 0
    %1472 = vmatpush2.bf16.msra.mxu0 0
    %1473 = vmatprep.subr.bf16.mxu0 0
    %1474 = vmatpush2.bf16.msra.mxu0 0
    %1475 = vmatprep.mubr.bf16.mxu0 0
    %1476 = vmatmul.mubr.bf16.gmra.mxu0 %v1158
    %v1477 = vpop.f32.mrf.mxu0
    %v1478 = vadd.f32 %v1442, %v1477
    %v1479 = vpop.f32.mrf.mxu0
    %v1480 = vpop.f32.mrf.mxu0
    %v1481 = vpop.f32.mrf.mxu0
    %1482 = vdwg.mxu0
    %v1483 = vtanh.pop %v1434
    %v1484 = vadd.f32 %v1434, 1e-05
    %v1485 = vxor.u32 %v1484, 2147483648
    %v1486 = vmul.f32 %v1485, 1.442695
    %v1487 = vpow.pop %v1486
    %v1488 = vadd.f32 %v1487, 1.0
    %v1489 = vrcp.pop %v1488
    %v1490 = vmul.f32 1.0, %v1489
    %v1491 = vtanh.pop %v1478
    %v1492 = vadd.f32 %v1478, 1e-05
    %v1493 = vmax.f32 %v1492, 0.0
    %vm1494 = vcmp.ne.f32.partialorder %v1492, %v1492
    %v1495 = vadd.f32 %v1492, 0.0
    %v1496 = vand.u32 2147483647, %v1492
    %v1497 = vsub.f32 0.0, %v1496
    %v1498 = vmul.f32 %v1497, 1.442695
    %v1499 = vpow.pop %v1498
    %v1500 = vadd.f32 %v1499, 1.0
    %v1501 = vlog2.pop %v1500
    %v1502 = vmul.f32 %v1501, 0.6931472
    %v1503 = vmul.f32 -0.5, %v1499
    %v1504 = vadd.f32 %v1503, 1.0
    %v1505 = vmul.f32 %v1504, %v1499
    %v1506 = vand.u32 2147483647, %v1499
    %vm1507 = vcmp.lt.f32.partialorder %v1506, 0.0004427343
    %v1508 = vsel %vm1507, %v1505, %v1502
    %v1509 = vadd.f32 %v1493, %v1508
    %v1510 = vsel %vm1494, %v1495, %v1509
    %s1511 = sld [smem:[#allocation2]]
    %s1512 = sld [smem:[#allocation2 + $0x1]]
    %v1513 = vstv %s1511
    %v1514 = vmul.f32 %v1490, %v1513
    %1516 = vrot.lane.b32.xlu0 %v1514, 127
    %v1517 = vpop.permute.xlu0 %1516
    %v1519 = vadd.f32 %v1483, %v1517
    %v1520 = vmax.f32 %v1519, -1.0
    %v1521 = vmin.f32 %v1520, 1.0
    %v1522 = vlaneseq
    %v1523 = vshrl.u32 %v1522, 7
    %v1524 = vsub.s32 0, %v1523
    %v1525 = vrot.slane %v1521, %v1524
    %v1526 = vsub.f32 %v1525, %v1483
    %v1527 = vmul.f32 %v1526, %v1526
    %v1528 = vsub.f32 0.0, %v1527
    %v1529 = vmul.f32 %v1490, 2.0
    %v1530 = vmul.f32 %v1529, %v1490
    %1532 = vrot.lane.b32.xlu0 %v1530, 127
    %v1533 = vpop.permute.xlu0 %1532
    %v1535 = vrcp.pop %v1533
    %v1536 = vmul.f32 %v1528, %v1535
    %v1537 = vlog2.pop %v1490
    %v1538 = vmul.f32 %v1537, 0.6931472
    %1540 = vrot.lane.b32.xlu0 %v1538, 127
    %v1541 = vpop.permute.xlu0 %1540
    %v1543 = vsub.f32 %v1536, %v1541
    %v1544 = vsub.f32 %v1543, 0.9189385
    %v1545 = vstv %s1512
    %v1546 = vmul.f32 %v1510, %v1545
    %1548 = vrot.lane.b32.xlu0 %v1546, 127
    %v1549 = vpop.permute.xlu0 %1548
    %v1551 = vadd.f32 %v1491, %v1549
    %v1552 = vmax.f32 %v1551, -1.0
    %v1553 = vmin.f32 %v1552, 1.0
    %vm1554 = vcmp.eq.s32.totalorder %v180, 0
    %1556 = vset.pattern.permute.xlu0 0
    %1557 = vperm.xlu0 %1556, %v1483
    %v1558 = vpop.permute.xlu0 %1557
    %v1560 = vsel %vm1554, %v1558, 0.0
    %v1561 = vadd.f32 %v1560, 0.0
    %vm1562 = vcmp.eq.s32.totalorder %v180, 1
    %1564 = vset.pattern.permute.xlu0 1
    %1565 = vperm.xlu0 %1564, %v1490
    %v1566 = vpop.permute.xlu0 %1565
    %v1568 = vsel %vm1562, %v1566, 0.0
    %v1569 = vadd.f32 %v1561, %v1568
    %vm1570 = vcmp.eq.s32.totalorder %v180, 2
    %1572 = vset.pattern.permute.xlu0 0
    %1573 = vperm.xlu0 %1572, %v1521
    %v1574 = vpop.permute.xlu0 %1573
    %v1576 = vsel %vm1570, %v1574, 0.0
    %v1577 = vadd.f32 %v1569, %v1576
    %vm1578 = vcmp.eq.s32.totalorder %v180, 3
    %1580 = vset.pattern.permute.xlu0 0
    %1581 = vperm.xlu0 %1580, %v1544
    %v1582 = vpop.permute.xlu0 %1581
    %v1584 = vsel %vm1578, %v1582, 0.0
    %v1585 = vadd.f32 %v1577, %v1584
    %vm1586 = vcmp.eq.s32.totalorder %v180, 4
    %1588 = vset.pattern.permute.xlu0 2
    %1589 = vperm.xlu0 %1588, %v1491
    %v1590 = vpop.permute.xlu0 %1589
    %v1592 = vsel %vm1586, %v1590, 0.0
    %v1593 = vadd.f32 %v1585, %v1592
    %vm1594 = vcmp.eq.s32.totalorder %v180, 5
    %1596 = vset.pattern.permute.xlu0 3
    %1597 = vperm.xlu0 %1596, %v1510
    %v1598 = vpop.permute.xlu0 %1597
    %v1600 = vsel %vm1594, %v1598, 0.0
    %v1601 = vadd.f32 %v1593, %v1600
    %vm1602 = vcmp.eq.s32.totalorder %v180, 6
    %1604 = vset.pattern.permute.xlu0 2
    %1605 = vperm.xlu0 %1604, %v1553
    %v1606 = vpop.permute.xlu0 %1605
    %v1608 = vsel %vm1602, %v1606, 0.0
    %v1609 = vadd.f32 %v1601, %v1608
    %1610 = vst [vmem:[%s4] sm:$0xff] %v1609
    // Predicated region
    $region22: #{_actor_forward.1} parent=1 // pred_check
      _
    $region23: #{_actor_forward.1} parent=1 // pred_check_branch
      %1612 = sbr.rel (0) target = $region25
    $region24: #{_actor_forward.1} parent=1 // pred_region
      _
    $region25: #{_actor_forward.1} parent=1 // pred_fallthru
      _
    // Predicated region
    $region26: #{_actor_forward.1} parent=1 // pred_check
      _
    $region27: #{_actor_forward.1} parent=1 // pred_check_branch
      %1614 = sbr.rel (0) target = $region29
    $region28: #{_actor_forward.1} parent=1 // pred_region
      _
    $region29: #{_actor_forward.1} parent=1 // pred_fallthru
      _
    %1615 = vsyncpa [#allocation3], 1

</llo_original>
